<compile_context>
chip_gen: v6e
topology: v6e:2x2x1
jax: 0.10.0
libtpu: 0.0.40
codegen_flags: <defaults>
</compile_context>

<pallas_src>
import jax
import jax.numpy as jnp
from jax import lax
from jax.experimental import pallas as pl
from jax.experimental.pallas import tpu as pltpu


def _round_up(v, m):
    return ((v + m - 1) // m) * m


def _valuenet_mlp_kernel(x_ref, w1_ref, b1_ref, w2_ref, b2_ref, w3_ref,
                         b3_ref, o_ref):
    """Fused transposed MLP: relu(W1@x^T+b1) -> relu(W2@.+b2) -> sum(w3*.)+b3.

    x_ref  : [tile_b, state_dim] f32      w1_ref : [hidden, state_dim] bf16
    b1_ref : [hidden, 1] f32              w2_ref : [hidden, hidden]    bf16
    b2_ref : [hidden, 1] f32              w3_ref : [hidden, 1]         f32
    b3_ref : [1] f32 (SMEM)               o_ref  : [1, 1, tile_b]      f32
    """
    x_bf = x_ref[...].astype(jnp.bfloat16)                       # [tb, S]

    # Layer 1: contract state_dim (last dim of both operands) -> [hidden, tb].
    # bf16 inputs with f32 accumulation (single-pass MXU); no transpose needed.
    h1 = lax.dot_general(w1_ref[...], x_bf,
                         dimension_numbers=(((1,), (1,)), ((), ())),
                         preferred_element_type=jnp.float32)
    h1 = jnp.maximum(h1 + b1_ref[...], 0.0)                      # [hidden, tb] f32

    # Layer 2: [hidden, hidden] @ [hidden, tb] on the MXU.
    h2 = jnp.dot(w2_ref[...], h1.astype(jnp.bfloat16),
                 preferred_element_type=jnp.float32)
    h2 = jnp.maximum(h2 + b2_ref[...], 0.0)                      # [hidden, tb] f32

    # Layer 3 (hidden -> 1): VPU multiply + sublane reduce keeps the batch on
    # lanes and avoids a near-empty 1-column MXU pass.
    y = jnp.sum(h2 * w3_ref[...], axis=0, keepdims=True) + b3_ref[0]   # [1, tb]
    o_ref[0] = y.astype(o_ref.dtype)


def _pick_tile_b(B, state_dim, hidden, max_tile, vmem_budget_bytes):
    """Batch tile (lane-axis width per grid step).

    Big tiles amortize the ~0.35us/step pipeline overhead; >=2 tiles keeps both
    v7x TensorCores busy under dimension_semantics=("parallel",).  The tile is
    shrunk until a conservative per-step VMEM estimate fits the budget (keeps
    v7x's 64 MiB physical / 32 MiB scoped VMEM safe even with state_dim=512).
    """
    tb = min(max_tile, max(128, _round_up(-(-B // 2), 128)))
    while tb > 128:
        intermediates = 4 * hidden * tb * 4            # h1/h2 f32 + bf16 temporaries
        x_io = tb * state_dim * 4 * 2 + tb * 4 * 2     # double-buffered x / out tiles
        weights = (hidden * state_dim + hidden * hidden) * 2 * 2   # bf16, 2x buffered
        biases = 3 * hidden * 128 * 4 * 2              # (hidden,1) blocks lane-pad to 128
        if intermediates + x_io + weights + biases <= vmem_budget_bytes:
            break
        tb -= 128
    return tb


def value_net_forward(x0, params, *, max_tile_b=4096):
    """ValueNet MLP head on features x0: [B, state_dim] -> [B, 1]."""
    w1, b1, w2, b2, w3, b3 = params
    B, state_dim = x0.shape
    hidden = w1.shape[0]

    # bf16 MXU inputs (f32 accumulation happens in-kernel); biases stay f32.
    w1_bf = w1.astype(jnp.bfloat16)
    w2_bf = w2.astype(jnp.bfloat16)

    tile_b = _pick_tile_b(B, state_dim, hidden,
                          max_tile=max_tile_b, vmem_budget_bytes=24 << 20)

    # No wrapper-side transpose, and no pad except for tiny batches (B < tile_b),
    # where we pad x up to a single lane-aligned tile (a few KiB at most).
    # For B >= tile_b the ragged last block is handled by Pallas block clipping;
    # padded batch columns are independent and are sliced off below.
    if B < tile_b:
        x_in = jnp.pad(x0, ((0, tile_b - B), (0, 0)))
    else:
        x_in = x0
    num_tiles = pl.cdiv(x_in.shape[0], tile_b)

    grid_spec = pltpu.PrefetchScalarGridSpec(
        num_scalar_prefetch=0,
        grid=(num_tiles,),
        in_specs=[
            pl.BlockSpec((tile_b, state_dim), lambda i: (i, 0)),   # x tile [tb, S]
            pl.BlockSpec((hidden, state_dim), lambda i: (0, 0)),   # W1 [out, in] bf16
            pl.BlockSpec((hidden, 1), lambda i: (0, 0)),           # b1 column f32
            pl.BlockSpec((hidden, hidden), lambda i: (0, 0)),      # W2 [out, in] bf16
            pl.BlockSpec((hidden, 1), lambda i: (0, 0)),           # b2 column f32
            pl.BlockSpec((hidden, 1), lambda i: (0, 0)),           # w3 column f32
            pl.BlockSpec(memory_space=pltpu.MemorySpace.SMEM),     # b3 scalar
        ],
        # One [1, tile_b] row of values per grid step (lane-dense; the single
        # sublane makes it a masked store, but the output is tiny).
        out_specs=pl.BlockSpec((1, 1, tile_b), lambda i: (i, 0, 0)),
    )

    out = pl.pallas_call(
        _valuenet_mlp_kernel,
        out_shape=jax.ShapeDtypeStruct((num_tiles, 1, tile_b), jnp.float32),
        grid_spec=grid_spec,
        compiler_params=pltpu.CompilerParams(
            dimension_semantics=("parallel",),
            # Explicit so large tiles also compile on v5e (16 MiB default
            # scoped VMEM); equals the v6e/v7x defaults.
            vmem_limit_bytes=32 * 1024 * 1024),
    )(x_in, w1_bf, b1, w2_bf, b2, w3, b3)

    # [num_tiles, 1, tile_b] -> [B, 1] (drop any batch padding).
    return out.reshape(num_tiles * tile_b, 1)[:B]


def init_value_net_params(key, state_dim, hidden=256, edge=0.003):
    """Parameter init mirroring the PyTorch module, in kernel layout.

    W is PyTorch-native [out_features, in_features]; biases are [out, 1]
    columns; b3 is a length-1 vector (SMEM scalar).  linear1/linear2 use the
    default U(-1/sqrt(fan_in), 1/sqrt(fan_in)); linear3 weight & bias are
    U(-edge, edge) as in the module.
    """
    k1, k2, k3, k4, k5, k6 = jax.random.split(key, 6)

    lim1 = 1.0 / (float(state_dim) ** 0.5)
    w1 = jax.random.uniform(k1, (hidden, state_dim), jnp.float32, -lim1, lim1)
    b1 = jax.random.uniform(k2, (hidden, 1), jnp.float32, -lim1, lim1)

    lim2 = 1.0 / (float(hidden) ** 0.5)
    w2 = jax.random.uniform(k3, (hidden, hidden), jnp.float32, -lim2, lim2)
    b2 = jax.random.uniform(k4, (hidden, 1), jnp.float32, -lim2, lim2)

    w3 = jax.random.uniform(k5, (hidden, 1), jnp.float32, -edge, edge)
    b3 = jax.random.uniform(k6, (1,), jnp.float32, -edge, edge)

    return (w1, b1, w2, b2, w3, b3)


def _reference_forward(x0, params):
    """Pure-JAX f32 reference matching the PyTorch module's MLP head."""
    w1, b1, w2, b2, w3, b3 = params
    h1 = jnp.maximum(x0 @ w1.T + b1[:, 0], 0.0)
    h2 = jnp.maximum(h1 @ w2.T + b2[:, 0], 0.0)
    return h2 @ w3 + b3


def _reference_forward_bf16(x0, params):
    """Reference with the same bf16-input / f32-accumulate quantization."""
    w1, b1, w2, b2, w3, b3 = params
    bf = jnp.bfloat16
    h1 = jnp.dot(x0.astype(bf), w1.astype(bf).T,
                 preferred_element_type=jnp.float32) + b1[:, 0]
    h1 = jnp.maximum(h1, 0.0)
    h2 = jnp.dot(h1.astype(bf), w2.astype(bf).T,
                 preferred_element_type=jnp.float32) + b2[:, 0]
    h2 = jnp.maximum(h2, 0.0)
    return h2 @ w3 + b3


if __name__ == "__main__":
    key = jax.random.PRNGKey(0)
    k_param, k_a, k_b, k_c = jax.random.split(key, 4)

    state_dim = 32  # stand-in for the resnet feature width
    params = init_value_net_params(k_param, state_dim)

    fwd = jax.jit(value_net_forward)

    # Even multi-tile batch: 2 grid steps of 256 (both v7x TensorCores usable).
    x_a = jax.random.normal(k_a, (512, state_dim), jnp.float32)
    out_a = jax.block_until_ready(fwd(x_a, params))
    assert out_a.shape == (512, 1)
    assert jnp.allclose(out_a, _reference_forward_bf16(x_a, params),
                        atol=2e-3, rtol=2e-3)
    assert jnp.allclose(out_a, _reference_forward(x_a, params),
                        atol=1e-2, rtol=1e-2)

    # Ragged batch: last grid step only partially in-bounds (clipped in-kernel).
    x_b = jax.random.normal(k_b, (300, state_dim), jnp.float32)
    out_b = jax.block_until_ready(fwd(x_b, params))
    assert out_b.shape == (300, 1)
    assert jnp.allclose(out_b, _reference_forward_bf16(x_b, params),
                        atol=2e-3, rtol=2e-3)

    # Tiny batch (padded up to one 128-wide lane tile inside the wrapper).
    x_c = jax.random.normal(k_c, (8, state_dim), jnp.float32)
    out_c = jax.block_until_ready(fwd(x_c, params))
    assert out_c.shape == (8, 1)
    assert jnp.allclose(out_c, _reference_forward_bf16(x_c, params),
                        atol=2e-3, rtol=2e-3)

    print("KERNEL_OK")
</pallas_src>

<mosaic_0001>
module attributes {stable_mosaic.version = 11 : i64} {
  func.func @_valuenet_mlp_kernel(%arg0: i32, %arg1: memref<256x32xf32, #tpu.memory_space<vmem>>, %arg2: memref<256x32xbf16, #tpu.memory_space<vmem>>, %arg3: memref<256x1xf32, #tpu.memory_space<vmem>>, %arg4: memref<256x256xbf16, #tpu.memory_space<vmem>>, %arg5: memref<256x1xf32, #tpu.memory_space<vmem>>, %arg6: memref<256x1xf32, #tpu.memory_space<vmem>>, %arg7: memref<1xf32, #tpu.memory_space<smem>>, %arg8: memref<1x1x256xf32, #tpu.memory_space<vmem>>) attributes {dimension_semantics = [#tpu.dimension_semantics<parallel>], iteration_bounds = array<i64: 2>, scalar_prefetch = 0 : i64, scratch_operands = 0 : i64, tpu.core_type = #tpu.core_type<tc>, window_params = [{transform_indices = @transform_0, window_bounds = array<i64: 256, 32>}, {pipeline_mode = #tpu.pipeline_mode<synchronous>, transform_indices = @transform_1, window_bounds = array<i64: 256, 32>}, {pipeline_mode = #tpu.pipeline_mode<synchronous>, transform_indices = @transform_2, window_bounds = array<i64: 256, 1>}, {pipeline_mode = #tpu.pipeline_mode<synchronous>, transform_indices = @transform_3, window_bounds = array<i64: 256, 256>}, {pipeline_mode = #tpu.pipeline_mode<synchronous>, transform_indices = @transform_4, window_bounds = array<i64: 256, 1>}, {pipeline_mode = #tpu.pipeline_mode<synchronous>, transform_indices = @transform_5, window_bounds = array<i64: 256, 1>}, {transform_indices = @transform_6, window_bounds = array<i64: 1>}, {transform_indices = @transform_7, window_bounds = array<i64: 1, 1, 256>}]} {
    %c0 = arith.constant 0 : index
    %c0_0 = arith.constant 0 : index
    %0 = vector.load %arg1[%c0, %c0_0] : memref<256x32xf32, #tpu.memory_space<vmem>>, vector<256x32xf32>
    %1 = arith.truncf %0 : vector<256x32xf32> to vector<256x32xbf16>
    %c0_1 = arith.constant 0 : index
    %c0_2 = arith.constant 0 : index
    %2 = vector.load %arg2[%c0_1, %c0_2] : memref<256x32xbf16, #tpu.memory_space<vmem>>, vector<256x32xbf16>
    %cst = arith.constant dense<0.000000e+00> : vector<256x256xf32>
    %3 = tpu.matmul %2, %1, %cst {dimension_numbers = #tpu.dot_dimension_numbers<[1], [1], [0], [0], [0, 0, 1, 0], [], []>} : vector<256x32xbf16>, vector<256x32xbf16>, vector<256x256xf32> -> vector<256x256xf32>
    %c0_3 = arith.constant 0 : index
    %c0_4 = arith.constant 0 : index
    %4 = vector.load %arg3[%c0_3, %c0_4] : memref<256x1xf32, #tpu.memory_space<vmem>>, vector<256x1xf32>
    %5 = vector.broadcast %4 : vector<256x1xf32> to vector<256x256xf32>
    %6 = arith.addf %3, %5 : vector<256x256xf32>
    %cst_5 = arith.constant 0.000000e+00 : f32
    %7 = vector.broadcast %cst_5 : f32 to vector<256x256xf32>
    %8 = arith.maximumf %6, %7 : vector<256x256xf32>
    %c0_6 = arith.constant 0 : index
    %c0_7 = arith.constant 0 : index
    %9 = vector.load %arg4[%c0_6, %c0_7] : memref<256x256xbf16, #tpu.memory_space<vmem>>, vector<256x256xbf16>
    %10 = arith.truncf %8 : vector<256x256xf32> to vector<256x256xbf16>
    %cst_8 = arith.constant dense<0.000000e+00> : vector<256x256xf32>
    %11 = tpu.matmul %9, %10, %cst_8 {dimension_numbers = #tpu.dot_dimension_numbers<[1], [0], [0], [1], [0, 0, 1, 1], [], []>} : vector<256x256xbf16>, vector<256x256xbf16>, vector<256x256xf32> -> vector<256x256xf32>
    %c0_9 = arith.constant 0 : index
    %c0_10 = arith.constant 0 : index
    %12 = vector.load %arg5[%c0_9, %c0_10] : memref<256x1xf32, #tpu.memory_space<vmem>>, vector<256x1xf32>
    %13 = vector.broadcast %12 : vector<256x1xf32> to vector<256x256xf32>
    %14 = arith.addf %11, %13 : vector<256x256xf32>
    %cst_11 = arith.constant 0.000000e+00 : f32
    %15 = vector.broadcast %cst_11 : f32 to vector<256x256xf32>
    %16 = arith.maximumf %14, %15 : vector<256x256xf32>
    %c0_12 = arith.constant 0 : index
    %c0_13 = arith.constant 0 : index
    %17 = vector.load %arg6[%c0_12, %c0_13] : memref<256x1xf32, #tpu.memory_space<vmem>>, vector<256x1xf32>
    %18 = vector.broadcast %17 : vector<256x1xf32> to vector<256x256xf32>
    %19 = arith.mulf %16, %18 : vector<256x256xf32>
    %cst_14 = arith.constant dense<0.000000e+00> : vector<256xf32>
    %20 = vector.multi_reduction <add>, %19, %cst_14 [0] : vector<256x256xf32> to vector<256xf32>
    %21 = vector.shape_cast %20 : vector<256xf32> to vector<1x256xf32>
    %c0_15 = arith.constant 0 : index
    %22 = memref.load %arg7[%c0_15] : memref<1xf32, #tpu.memory_space<smem>>
    %23 = vector.broadcast %22 : f32 to vector<1x256xf32>
    %24 = arith.addf %21, %23 : vector<1x256xf32>
    %c0_16 = arith.constant 0 : index
    %c0_17 = arith.constant 0 : index
    %c0_18 = arith.constant 0 : index
    %25 = vector.load %arg8[%c0_16, %c0_17, %c0_18] : memref<1x1x256xf32, #tpu.memory_space<vmem>>, vector<1x1x256xf32>
    %26 = vector.shape_cast %25 : vector<1x1x256xf32> to vector<1x256xf32>
    %27 = vector.shape_cast %24 : vector<1x256xf32> to vector<1x1x256xf32>
    tpu.vector_store %arg8[%c0_16, %c0_17, %c0_18], %27 {strides = array<i32>} : memref<1x1x256xf32, #tpu.memory_space<vmem>>, vector<1x1x256xf32>,
    return
  }
  func.func @transform_0(%arg0: i32) -> (i32, i32) {
    %c0_i32 = arith.constant 0 : i32
    %c0_i32_0 = arith.constant 0 : i32
    return %arg0, %c0_i32 : i32, i32
  }
  func.func @transform_1(%arg0: i32) -> (i32, i32) {
    %c0_i32 = arith.constant 0 : i32
    %c0_i32_0 = arith.constant 0 : i32
    %c0_i32_1 = arith.constant 0 : i32
    return %c0_i32, %c0_i32_0 : i32, i32
  }
  func.func @transform_2(%arg0: i32) -> (i32, i32) {
    %c0_i32 = arith.constant 0 : i32
    %c0_i32_0 = arith.constant 0 : i32
    %c0_i32_1 = arith.constant 0 : i32
    return %c0_i32, %c0_i32_0 : i32, i32
  }
  func.func @transform_3(%arg0: i32) -> (i32, i32) {
    %c0_i32 = arith.constant 0 : i32
    %c0_i32_0 = arith.constant 0 : i32
    %c0_i32_1 = arith.constant 0 : i32
    return %c0_i32, %c0_i32_0 : i32, i32
  }
  func.func @transform_4(%arg0: i32) -> (i32, i32) {
    %c0_i32 = arith.constant 0 : i32
    %c0_i32_0 = arith.constant 0 : i32
    %c0_i32_1 = arith.constant 0 : i32
    return %c0_i32, %c0_i32_0 : i32, i32
  }
  func.func @transform_5(%arg0: i32) -> (i32, i32) {
    %c0_i32 = arith.constant 0 : i32
    %c0_i32_0 = arith.constant 0 : i32
    %c0_i32_1 = arith.constant 0 : i32
    return %c0_i32, %c0_i32_0 : i32, i32
  }
  func.func @transform_6(%arg0: i32) -> i32 {
    %c0_i32 = arith.constant 0 : i32
    %c0_i32_0 = arith.constant 0 : i32
    return %c0_i32 : i32
  }
  func.func @transform_7(%arg0: i32) -> (i32, i32, i32) {
    %c0_i32 = arith.constant 0 : i32
    %c0_i32_0 = arith.constant 0 : i32
    %c0_i32_1 = arith.constant 0 : i32
    return %arg0, %c0_i32, %c0_i32_0 : i32, i32, i32
  }
}

</mosaic_0001>

<llo_original>
// kernel: value_net_forward.1
$region0: #{value_net_forward.1}
  #allocation0 [shape = 'u32[]', space=smem, size = 0x4, offset = 0x4, fixed_abs, tag = 'smem constant byte address 0x4 - core index']
  #allocation1 [shape = 'u32[144,128]{1,0:T(1,128)}', space=vmem, size = 0x12000, scoped, tag = 'internal scratch']
  #allocation2 [shape = 'f32[1]{0:T(128)S(6)}', space=smem, size = 0x200, scoped, tag = 'scoped memory for value_net_forward.1']
  %s0 = inlined_call_operand.vmem [shape: f32[512,32], index: 0, kind: input, shape index: {}]
  %s1 = inlined_call_operand.vmem [shape: bf16[256,32], index: 1, kind: input, shape index: {}]
  %s2 = inlined_call_operand.vmem [shape: f32[256,1], index: 2, kind: input, shape index: {}]
  %s3 = inlined_call_operand.vmem [shape: bf16[256,256], index: 3, kind: input, shape index: {}]
  %s4 = inlined_call_operand.vmem [shape: f32[256,1], index: 4, kind: input, shape index: {}]
  %s5 = inlined_call_operand.vmem [shape: f32[256,1], index: 5, kind: input, shape index: {}]
  %s6 = inlined_call_operand.<no memory space> [shape: f32[1], index: 6, kind: input, shape index: {}]
  %s7 = inlined_call_operand.hbm [shape: f32[2,1,256], index: 7, kind: output, shape index: {}]
  %s8 = sld [smem:[#allocation0]]
  $region61: #{value_net_forward.1} parent=0
    _
  %s10 = ssub.s32 1, %s8
  %s11 = scalar_select 0, %s10, %s8
  %12 = sst [smem:[#allocation2]] %s6
  $region1: #{value_net_forward.1} parent=0
    #allocation3 [shape = 'u8[2048]{0}', space=vmem, size = 0x800, scoped, tag = 'output window, operand 0']
    #allocation4 [shape = 's32[2]{0}', space=sflag, size = 0x8, scoped, tag = 'scoped memory for value_net_forward.1']
    %13 = vsyncpa [#allocation4], 0
    %s14 = scalar_lea.sflag [#allocation4], 1
    %15 = vsyncpa %s14, 0
    loop: start=0, step=1, limit=4
    $region2: #{value_net_forward.1} parent=1 // loop_pre_header
      _
    $region3: #{value_net_forward.1} parent=1 // loop_header
      %s17 = sphi 0, %s21
      %p18 = scmp.ge.s32.totalorder %s17, 4
      %s27 = sphi 0, %s29
      %s30 = sphi 0, %s27
      %s31 = sphi 0, %s30
      %s47 = sphi 0, %s31
      %s51 = sphi 0, %s51
      %s53 = sphi 0, %s51
      %s54 = sphi 0, %s53
      %s68 = sphi 0, %s54
      %s72 = sphi 0, %s72
      %s74 = sphi 0, %s72
      %s75 = sphi 0, %s74
      %s89 = sphi 0, %s75
      %s93 = sphi 0, %s93
      %s95 = sphi 0, %s93
      %s96 = sphi 0, %s95
      %s110 = sphi 0, %s96
      %s114 = sphi 0, %s114
      %s116 = sphi 0, %s114
      %s117 = sphi 0, %s116
      %s131 = sphi 0, %s117
      %s135 = sphi 0, %s135
      %s137 = sphi 0, %s135
      %s138 = sphi 0, %s137
      %s152 = sphi 0, %s138
      %s156 = sphi 0, %s156
      %s158 = sphi 0, %s156
      %s159 = sphi 0, %s158
      %s173 = sphi 0, %s159
      %s179 = sphi 0, %s181
      %s182 = sphi 0, %s179
      %s183 = sphi 0, %s182
      %s199 = sphi 0, %s183
    $region4: #{value_net_forward.1} parent=1 // loop_header_branch
      %20 = sbr.rel (%p18) target = $region8
    $region5: #{value_net_forward.1} parent=1 // loop_body
      %s22 = ssub.s32 %s17, 1
      %s23 = ssub.s32 %s17, 2
      %s24 = sadd.s32 %s17, 1
      %s25 = ssub.s32 %s17, %s24
      %p26 = scmp.eq.s32.totalorder %s25, 0
      %s28 = sadd.s32 %s27, 1
      %s29 = scalar_select %p26, %s27, %s28
      %p32 = pneg %p26
      %p33 = scmp.eq.s32.totalorder %s17, 1
      %p34 = por %p32, %p33
      %p35 = scmp.ne.s32.totalorder %s27, %s30
      %p36 = scmp.eq.s32.totalorder %s17, 0
      %p37 = por %p35, %p36
      %p38 = scmp.ne.s32.totalorder %s27, %s30
      %p39 = scmp.eq.s32.totalorder %s22, 1
      %p40 = por %p38, %p39
      %p41 = scmp.ne.s32.totalorder %s30, %s31
      %p42 = scmp.eq.s32.totalorder %s22, 0
      %p43 = por %p41, %p42
      %p44 = scmp.ne.s32.totalorder %s30, %s31
      %p45 = scmp.eq.s32.totalorder %s23, 1
      %p46 = por %p44, %p45
      %p48 = scmp.ne.s32.totalorder %s31, %s47
      %p49 = scmp.eq.s32.totalorder %s23, 0
      %p50 = por %p48, %p49
      %s52 = sadd.s32 %s51, 1
      %p55 = scmp.eq.s32.totalorder %s17, 1
      %p56 = scmp.ne.s32.totalorder %s51, %s53
      %p57 = scmp.eq.s32.totalorder %s17, 0
      %p58 = por %p56, %p57
      %p59 = scmp.ne.s32.totalorder %s51, %s53
      %p60 = scmp.eq.s32.totalorder %s22, 1
      %p61 = por %p59, %p60
      %p62 = scmp.ne.s32.totalorder %s53, %s54
      %p63 = scmp.eq.s32.totalorder %s22, 0
      %p64 = por %p62, %p63
      %p65 = scmp.ne.s32.totalorder %s53, %s54
      %p66 = scmp.eq.s32.totalorder %s23, 1
      %p67 = por %p65, %p66
      %p69 = scmp.ne.s32.totalorder %s54, %s68
      %p70 = scmp.eq.s32.totalorder %s23, 0
      %p71 = por %p69, %p70
      %s73 = sadd.s32 %s72, 1
      %p76 = scmp.eq.s32.totalorder %s17, 1
      %p77 = scmp.ne.s32.totalorder %s72, %s74
      %p78 = scmp.eq.s32.totalorder %s17, 0
      %p79 = por %p77, %p78
      %p80 = scmp.ne.s32.totalorder %s72, %s74
      %p81 = scmp.eq.s32.totalorder %s22, 1
      %p82 = por %p80, %p81
      %p83 = scmp.ne.s32.totalorder %s74, %s75
      %p84 = scmp.eq.s32.totalorder %s22, 0
      %p85 = por %p83, %p84
      %p86 = scmp.ne.s32.totalorder %s74, %s75
      %p87 = scmp.eq.s32.totalorder %s23, 1
      %p88 = por %p86, %p87
      %p90 = scmp.ne.s32.totalorder %s75, %s89
      %p91 = scmp.eq.s32.totalorder %s23, 0
      %p92 = por %p90, %p91
      %s94 = sadd.s32 %s93, 1
      %p97 = scmp.eq.s32.totalorder %s17, 1
      %p98 = scmp.ne.s32.totalorder %s93, %s95
      %p99 = scmp.eq.s32.totalorder %s17, 0
      %p100 = por %p98, %p99
      %p101 = scmp.ne.s32.totalorder %s93, %s95
      %p102 = scmp.eq.s32.totalorder %s22, 1
      %p103 = por %p101, %p102
      %p104 = scmp.ne.s32.totalorder %s95, %s96
      %p105 = scmp.eq.s32.totalorder %s22, 0
      %p106 = por %p104, %p105
      %p107 = scmp.ne.s32.totalorder %s95, %s96
      %p108 = scmp.eq.s32.totalorder %s23, 1
      %p109 = por %p107, %p108
      %p111 = scmp.ne.s32.totalorder %s96, %s110
      %p112 = scmp.eq.s32.totalorder %s23, 0
      %p113 = por %p111, %p112
      %s115 = sadd.s32 %s114, 1
      %p118 = scmp.eq.s32.totalorder %s17, 1
      %p119 = scmp.ne.s32.totalorder %s114, %s116
      %p120 = scmp.eq.s32.totalorder %s17, 0
      %p121 = por %p119, %p120
      %p122 = scmp.ne.s32.totalorder %s114, %s116
      %p123 = scmp.eq.s32.totalorder %s22, 1
      %p124 = por %p122, %p123
      %p125 = scmp.ne.s32.totalorder %s116, %s117
      %p126 = scmp.eq.s32.totalorder %s22, 0
      %p127 = por %p125, %p126
      %p128 = scmp.ne.s32.totalorder %s116, %s117
      %p129 = scmp.eq.s32.totalorder %s23, 1
      %p130 = por %p128, %p129
      %p132 = scmp.ne.s32.totalorder %s117, %s131
      %p133 = scmp.eq.s32.totalorder %s23, 0
      %p134 = por %p132, %p133
      %s136 = sadd.s32 %s135, 1
      %p139 = scmp.eq.s32.totalorder %s17, 1
      %p140 = scmp.ne.s32.totalorder %s135, %s137
      %p141 = scmp.eq.s32.totalorder %s17, 0
      %p142 = por %p140, %p141
      %p143 = scmp.ne.s32.totalorder %s135, %s137
      %p144 = scmp.eq.s32.totalorder %s22, 1
      %p145 = por %p143, %p144
      %p146 = scmp.ne.s32.totalorder %s137, %s138
      %p147 = scmp.eq.s32.totalorder %s22, 0
      %p148 = por %p146, %p147
      %p149 = scmp.ne.s32.totalorder %s137, %s138
      %p150 = scmp.eq.s32.totalorder %s23, 1
      %p151 = por %p149, %p150
      %p153 = scmp.ne.s32.totalorder %s138, %s152
      %p154 = scmp.eq.s32.totalorder %s23, 0
      %p155 = por %p153, %p154
      %s157 = sadd.s32 %s156, 1
      %p160 = scmp.eq.s32.totalorder %s17, 1
      %p161 = scmp.ne.s32.totalorder %s156, %s158
      %p162 = scmp.eq.s32.totalorder %s17, 0
      %p163 = por %p161, %p162
      %p164 = scmp.ne.s32.totalorder %s156, %s158
      %p165 = scmp.eq.s32.totalorder %s22, 1
      %p166 = por %p164, %p165
      %p167 = scmp.ne.s32.totalorder %s158, %s159
      %p168 = scmp.eq.s32.totalorder %s22, 0
      %p169 = por %p167, %p168
      %p170 = scmp.ne.s32.totalorder %s158, %s159
      %p171 = scmp.eq.s32.totalorder %s23, 1
      %p172 = por %p170, %p171
      %p174 = scmp.ne.s32.totalorder %s159, %s173
      %p175 = scmp.eq.s32.totalorder %s23, 0
      %p176 = por %p174, %p175
      %s177 = ssub.s32 %s17, %s24
      %p178 = scmp.eq.s32.totalorder %s177, 0
      %s180 = sadd.s32 %s179, 1
      %s181 = scalar_select %p178, %s179, %s180
      %p184 = pneg %p178
      %p185 = scmp.eq.s32.totalorder %s17, 1
      %p186 = por %p184, %p185
      %p187 = scmp.ne.s32.totalorder %s179, %s182
      %p188 = scmp.eq.s32.totalorder %s17, 0
      %p189 = por %p187, %p188
      %p190 = scmp.ne.s32.totalorder %s179, %s182
      %p191 = scmp.eq.s32.totalorder %s22, 1
      %p192 = por %p190, %p191
      %p193 = scmp.ne.s32.totalorder %s182, %s183
      %p194 = scmp.eq.s32.totalorder %s22, 0
      %p195 = por %p193, %p194
      %p196 = scmp.ne.s32.totalorder %s182, %s183
      %p197 = scmp.eq.s32.totalorder %s23, 1
      %p198 = por %p196, %p197
      %p200 = scmp.ne.s32.totalorder %s183, %s199
      %p201 = scmp.eq.s32.totalorder %s23, 0
      %p202 = por %p200, %p201
      %p203 = scmp.le.s32.totalorder 1, %s17
      %p204 = scmp.lt.s32.totalorder %s17, 3
      %p205 = pnand %p203, %p204
      %p206 = pneg %p205
      // Predicated region
      $region9: #{value_net_forward.1} parent=5 // pred_check
        _
      $region10: #{value_net_forward.1} parent=5 // pred_check_branch
        %208 = sbr.rel (%p205) target = $region12
      $region11: #{value_net_forward.1} parent=5 // pred_region
        %s209 = ssub.s32 %s17, 1
        // Predicated region
        $region13: #{value_net_forward.1} parent=11 // pred_check
          %p210 = pneg %p64
        $region14: #{value_net_forward.1} parent=11 // pred_check_branch
          %212 = sbr.rel (%p210) target = $region16
        $region15: #{value_net_forward.1} parent=11 // pred_region
          _
        $region16: #{value_net_forward.1} parent=11 // pred_fallthru
          _
        // Predicated region
        $region17: #{value_net_forward.1} parent=11 // pred_check
          %p213 = pneg %p85
        $region18: #{value_net_forward.1} parent=11 // pred_check_branch
          %215 = sbr.rel (%p213) target = $region20
        $region19: #{value_net_forward.1} parent=11 // pred_region
          _
        $region20: #{value_net_forward.1} parent=11 // pred_fallthru
          _
        // Predicated region
        $region21: #{value_net_forward.1} parent=11 // pred_check
          %p216 = pneg %p106
        $region22: #{value_net_forward.1} parent=11 // pred_check_branch
          %218 = sbr.rel (%p216) target = $region24
        $region23: #{value_net_forward.1} parent=11 // pred_region
          _
        $region24: #{value_net_forward.1} parent=11 // pred_fallthru
          _
        // Predicated region
        $region25: #{value_net_forward.1} parent=11 // pred_check
          %p219 = pneg %p127
        $region26: #{value_net_forward.1} parent=11 // pred_check_branch
          %221 = sbr.rel (%p219) target = $region28
        $region27: #{value_net_forward.1} parent=11 // pred_region
          _
        $region28: #{value_net_forward.1} parent=11 // pred_fallthru
          _
        // Predicated region
        $region29: #{value_net_forward.1} parent=11 // pred_check
          %p222 = pneg %p148
        $region30: #{value_net_forward.1} parent=11 // pred_check_branch
          %224 = sbr.rel (%p222) target = $region32
        $region31: #{value_net_forward.1} parent=11 // pred_region
          _
        $region32: #{value_net_forward.1} parent=11 // pred_fallthru
          _
        // Predicated region
        $region33: #{value_net_forward.1} parent=11 // pred_check
          %p225 = pneg %p169
        $region34: #{value_net_forward.1} parent=11 // pred_check_branch
          %227 = sbr.rel (%p225) target = $region36
        $region35: #{value_net_forward.1} parent=11 // pred_region
          _
        $region36: #{value_net_forward.1} parent=11 // pred_fallthru
          _
      $region12: #{value_net_forward.1} parent=5 // pred_fallthru
        _
      %p228 = scmp.lt.s32.totalorder %s17, 2
      // Predicated region
      $region37: #{value_net_forward.1} parent=5 // pred_check
        %p229 = pneg %p228
      $region38: #{value_net_forward.1} parent=5 // pred_check_branch
        %231 = sbr.rel (%p229) target = $region40
      $region39: #{value_net_forward.1} parent=5 // pred_region
        // Predicated region
        $region41: #{value_net_forward.1} parent=39 // pred_check
          %p232 = pneg %p37
        $region42: #{value_net_forward.1} parent=39 // pred_check_branch
          %234 = sbr.rel (%p232) target = $region44
        $region43: #{value_net_forward.1} parent=39 // pred_region
          %s235 = smul.u32 32, %s17
          %p236 = scmp.lt.s32.totalorder %s235, 63
          %s237 = scalar_select %p236, %s235, 63
          %s238 = smul.addr %s237, 8
          %s239 = scalar_lea.vmem %s0, %s238
          %s240 = smul.u32 32, %s17
        $region44: #{value_net_forward.1} parent=39 // pred_fallthru
          _
      $region40: #{value_net_forward.1} parent=5 // pred_fallthru
        _
      %p241 = scmp.le.s32.totalorder 1, %s17
      %p242 = scmp.lt.s32.totalorder %s17, 3
      %p243 = pnand %p241, %p242
      %p244 = pneg %p243
      // Predicated region
      $region45: #{value_net_forward.1} parent=5 // pred_check
        _
      $region46: #{value_net_forward.1} parent=5 // pred_check_branch
        %246 = sbr.rel (%p243) target = $region48
      $region47: #{value_net_forward.1} parent=5 // pred_region
        %s247 = ssub.s32 %s17, 1
        %s248 = smul.u32 32, %s22
        %p249 = scmp.lt.s32.totalorder %s248, 63
        %s250 = scalar_select %p249, %s248, 63
        %s251 = smul.addr %s250, 8
        %s252 = scalar_lea.vmem %s0, %s251
        %p253 = pneg %p43
        %p254 = pneg %p40
        %p255 = pneg %p64
        %p256 = pneg %p61
        %p257 = pneg %p85
        %p258 = pneg %p82
        %p259 = pneg %p106
        %p260 = pneg %p103
        %p261 = pneg %p127
        %p262 = pneg %p124
        %p263 = pneg %p148
        %p264 = pneg %p145
        %p265 = pneg %p169
        %p266 = pneg %p166
        %p267 = pneg %p195
        %p268 = pneg %p192
        %s269 = sand.u32 %s182, 1
        %s270 = scalar_lea.sflag [#allocation4], %s269
        %s271 = sand.u32 %s182, 1
        %s272 = smul.addr %s271, 2
        %s273 = scalar_lea.vmem [#allocation3], %s272
        %s274 = smul.u32 32, %s22
        %p275 = scmp.lt.s32.totalorder %s274, 63
        %s276 = scalar_select %p275, %s274, 63
        %s277 = smul.addr %s276, 8
        %s278 = scalar_lea.vmem %s0, %s277
        %s279 = smul.u32 32, %s22
        %v281 = vld [vmem:[%s278] sm:$0xff]
        %v282 = vld [vmem:[%s278 + $0x8] sm:$0xff]
        %v283 = vld [vmem:[%s278 + $0x10] sm:$0xff]
        %v284 = vld [vmem:[%s278 + $0x18] sm:$0xff]
        %v285 = vld [vmem:[%s278 + $0x20] sm:$0xff]
        %v286 = vld [vmem:[%s278 + $0x28] sm:$0xff]
        %v287 = vld [vmem:[%s278 + $0x30] sm:$0xff]
        %v288 = vld [vmem:[%s278 + $0x38] sm:$0xff]
        %v289 = vld [vmem:[%s278 + $0x40] sm:$0xff]
        %v290 = vld [vmem:[%s278 + $0x48] sm:$0xff]
        %v291 = vld [vmem:[%s278 + $0x50] sm:$0xff]
        %v292 = vld [vmem:[%s278 + $0x58] sm:$0xff]
        %v293 = vld [vmem:[%s278 + $0x60] sm:$0xff]
        %v294 = vld [vmem:[%s278 + $0x68] sm:$0xff]
        %v295 = vld [vmem:[%s278 + $0x70] sm:$0xff]
        %v296 = vld [vmem:[%s278 + $0x78] sm:$0xff]
        %v297 = vld [vmem:[%s278 + $0x80] sm:$0xff]
        %v298 = vld [vmem:[%s278 + $0x88] sm:$0xff]
        %v299 = vld [vmem:[%s278 + $0x90] sm:$0xff]
        %v300 = vld [vmem:[%s278 + $0x98] sm:$0xff]
        %v301 = vld [vmem:[%s278 + $0xa0] sm:$0xff]
        %v302 = vld [vmem:[%s278 + $0xa8] sm:$0xff]
        %v303 = vld [vmem:[%s278 + $0xb0] sm:$0xff]
        %v304 = vld [vmem:[%s278 + $0xb8] sm:$0xff]
        %v305 = vld [vmem:[%s278 + $0xc0] sm:$0xff]
        %v306 = vld [vmem:[%s278 + $0xc8] sm:$0xff]
        %v307 = vld [vmem:[%s278 + $0xd0] sm:$0xff]
        %v308 = vld [vmem:[%s278 + $0xd8] sm:$0xff]
        %v309 = vld [vmem:[%s278 + $0xe0] sm:$0xff]
        %v310 = vld [vmem:[%s278 + $0xe8] sm:$0xff]
        %v311 = vld [vmem:[%s278 + $0xf0] sm:$0xff]
        %v312 = vld [vmem:[%s278 + $0xf8] sm:$0xff]
        %v313 = vpack.c.bf16 %v282, %v281
        %v314 = vpack.c.bf16 %v284, %v283
        %v315 = vpack.c.bf16 %v286, %v285
        %v316 = vpack.c.bf16 %v288, %v287
        %v317 = vpack.c.bf16 %v290, %v289
        %v318 = vpack.c.bf16 %v292, %v291
        %v319 = vpack.c.bf16 %v294, %v293
        %v320 = vpack.c.bf16 %v296, %v295
        %v321 = vpack.c.bf16 %v298, %v297
        %v322 = vpack.c.bf16 %v300, %v299
        %v323 = vpack.c.bf16 %v302, %v301
        %v324 = vpack.c.bf16 %v304, %v303
        %v325 = vpack.c.bf16 %v306, %v305
        %v326 = vpack.c.bf16 %v308, %v307
        %v327 = vpack.c.bf16 %v310, %v309
        %v328 = vpack.c.bf16 %v312, %v311
        %v329 = vld [vmem:[%s1] sm:$0xf]
        %v330 = vld [vmem:[%s1 + $0x4] sm:$0xf]
        %v331 = vld [vmem:[%s1 + $0x8] sm:$0xf]
        %v332 = vld [vmem:[%s1 + $0xc] sm:$0xf]
        %v333 = vld [vmem:[%s1 + $0x10] sm:$0xf]
        %v334 = vld [vmem:[%s1 + $0x14] sm:$0xf]
        %v335 = vld [vmem:[%s1 + $0x18] sm:$0xf]
        %v336 = vld [vmem:[%s1 + $0x1c] sm:$0xf]
        %v337 = vld [vmem:[%s1 + $0x20] sm:$0xf]
        %v338 = vld [vmem:[%s1 + $0x24] sm:$0xf]
        %v339 = vld [vmem:[%s1 + $0x28] sm:$0xf]
        %v340 = vld [vmem:[%s1 + $0x2c] sm:$0xf]
        %v341 = vld [vmem:[%s1 + $0x30] sm:$0xf]
        %v342 = vld [vmem:[%s1 + $0x34] sm:$0xf]
        %v343 = vld [vmem:[%s1 + $0x38] sm:$0xf]
        %v344 = vld [vmem:[%s1 + $0x3c] sm:$0xf]
        %v345 = vld [vmem:[%s1 + $0x40] sm:$0xf]
        %v346 = vld [vmem:[%s1 + $0x44] sm:$0xf]
        %v347 = vld [vmem:[%s1 + $0x48] sm:$0xf]
        %v348 = vld [vmem:[%s1 + $0x4c] sm:$0xf]
        %v349 = vld [vmem:[%s1 + $0x50] sm:$0xf]
        %v350 = vld [vmem:[%s1 + $0x54] sm:$0xf]
        %v351 = vld [vmem:[%s1 + $0x58] sm:$0xf]
        %v352 = vld [vmem:[%s1 + $0x5c] sm:$0xf]
        %v353 = vld [vmem:[%s1 + $0x60] sm:$0xf]
        %v354 = vld [vmem:[%s1 + $0x64] sm:$0xf]
        %v355 = vld [vmem:[%s1 + $0x68] sm:$0xf]
        %v356 = vld [vmem:[%s1 + $0x6c] sm:$0xf]
        %v357 = vld [vmem:[%s1 + $0x70] sm:$0xf]
        %v358 = vld [vmem:[%s1 + $0x74] sm:$0xf]
        %v359 = vld [vmem:[%s1 + $0x78] sm:$0xf]
        %v360 = vld [vmem:[%s1 + $0x7c] sm:$0xf]
        %v361 = vld [vmem:[%s2] sm:$0xff]
        %v362 = vld [vmem:[%s2 + $0x8] sm:$0xff]
        %v363 = vld [vmem:[%s2 + $0x10] sm:$0xff]
        %v364 = vld [vmem:[%s2 + $0x18] sm:$0xff]
        %v365 = vld [vmem:[%s2 + $0x20] sm:$0xff]
        %v366 = vld [vmem:[%s2 + $0x28] sm:$0xff]
        %v367 = vld [vmem:[%s2 + $0x30] sm:$0xff]
        %v368 = vld [vmem:[%s2 + $0x38] sm:$0xff]
        %v369 = vld [vmem:[%s2 + $0x40] sm:$0xff]
        %v370 = vld [vmem:[%s2 + $0x48] sm:$0xff]
        %v371 = vld [vmem:[%s2 + $0x50] sm:$0xff]
        %v372 = vld [vmem:[%s2 + $0x58] sm:$0xff]
        %v373 = vld [vmem:[%s2 + $0x60] sm:$0xff]
        %v374 = vld [vmem:[%s2 + $0x68] sm:$0xff]
        %v375 = vld [vmem:[%s2 + $0x70] sm:$0xff]
        %v376 = vld [vmem:[%s2 + $0x78] sm:$0xff]
        %v377 = vld [vmem:[%s2 + $0x80] sm:$0xff]
        %v378 = vld [vmem:[%s2 + $0x88] sm:$0xff]
        %v379 = vld [vmem:[%s2 + $0x90] sm:$0xff]
        %v380 = vld [vmem:[%s2 + $0x98] sm:$0xff]
        %v381 = vld [vmem:[%s2 + $0xa0] sm:$0xff]
        %v382 = vld [vmem:[%s2 + $0xa8] sm:$0xff]
        %v383 = vld [vmem:[%s2 + $0xb0] sm:$0xff]
        %v384 = vld [vmem:[%s2 + $0xb8] sm:$0xff]
        %v385 = vld [vmem:[%s2 + $0xc0] sm:$0xff]
        %v386 = vld [vmem:[%s2 + $0xc8] sm:$0xff]
        %v387 = vld [vmem:[%s2 + $0xd0] sm:$0xff]
        %v388 = vld [vmem:[%s2 + $0xd8] sm:$0xff]
        %v389 = vld [vmem:[%s2 + $0xe0] sm:$0xff]
        %v390 = vld [vmem:[%s2 + $0xe8] sm:$0xff]
        %v391 = vld [vmem:[%s2 + $0xf0] sm:$0xff]
        %v392 = vld [vmem:[%s2 + $0xf8] sm:$0xff]
        %394 = vset.pattern.permute.xlu0 0
        %395 = vperm.xlu0 %394, %v361
        %v396 = vpop.permute.xlu0 %395
        %399 = vset.pattern.permute.xlu0 0
        %400 = vperm.xlu0 %399, %v362
        %v401 = vpop.permute.xlu0 %400
        %404 = vset.pattern.permute.xlu0 0
        %405 = vperm.xlu0 %404, %v363
        %v406 = vpop.permute.xlu0 %405
        %409 = vset.pattern.permute.xlu0 0
        %410 = vperm.xlu0 %409, %v364
        %v411 = vpop.permute.xlu0 %410
        %414 = vset.pattern.permute.xlu0 0
        %415 = vperm.xlu0 %414, %v365
        %v416 = vpop.permute.xlu0 %415
        %419 = vset.pattern.permute.xlu0 0
        %420 = vperm.xlu0 %419, %v366
        %v421 = vpop.permute.xlu0 %420
        %424 = vset.pattern.permute.xlu0 0
        %425 = vperm.xlu0 %424, %v367
        %v426 = vpop.permute.xlu0 %425
        %429 = vset.pattern.permute.xlu0 0
        %430 = vperm.xlu0 %429, %v368
        %v431 = vpop.permute.xlu0 %430
        %434 = vset.pattern.permute.xlu0 0
        %435 = vperm.xlu0 %434, %v369
        %v436 = vpop.permute.xlu0 %435
        %439 = vset.pattern.permute.xlu0 0
        %440 = vperm.xlu0 %439, %v370
        %v441 = vpop.permute.xlu0 %440
        %444 = vset.pattern.permute.xlu0 0
        %445 = vperm.xlu0 %444, %v371
        %v446 = vpop.permute.xlu0 %445
        %449 = vset.pattern.permute.xlu0 0
        %450 = vperm.xlu0 %449, %v372
        %v451 = vpop.permute.xlu0 %450
        %454 = vset.pattern.permute.xlu0 0
        %455 = vperm.xlu0 %454, %v373
        %v456 = vpop.permute.xlu0 %455
        %459 = vset.pattern.permute.xlu0 0
        %460 = vperm.xlu0 %459, %v374
        %v461 = vpop.permute.xlu0 %460
        %464 = vset.pattern.permute.xlu0 0
        %465 = vperm.xlu0 %464, %v375
        %v466 = vpop.permute.xlu0 %465
        %469 = vset.pattern.permute.xlu0 0
        %470 = vperm.xlu0 %469, %v376
        %v471 = vpop.permute.xlu0 %470
        %474 = vset.pattern.permute.xlu0 0
        %475 = vperm.xlu0 %474, %v377
        %v476 = vpop.permute.xlu0 %475
        %479 = vset.pattern.permute.xlu0 0
        %480 = vperm.xlu0 %479, %v378
        %v481 = vpop.permute.xlu0 %480
        %484 = vset.pattern.permute.xlu0 0
        %485 = vperm.xlu0 %484, %v379
        %v486 = vpop.permute.xlu0 %485
        %489 = vset.pattern.permute.xlu0 0
        %490 = vperm.xlu0 %489, %v380
        %v491 = vpop.permute.xlu0 %490
        %494 = vset.pattern.permute.xlu0 0
        %495 = vperm.xlu0 %494, %v381
        %v496 = vpop.permute.xlu0 %495
        %499 = vset.pattern.permute.xlu0 0
        %500 = vperm.xlu0 %499, %v382
        %v501 = vpop.permute.xlu0 %500
        %504 = vset.pattern.permute.xlu0 0
        %505 = vperm.xlu0 %504, %v383
        %v506 = vpop.permute.xlu0 %505
        %509 = vset.pattern.permute.xlu0 0
        %510 = vperm.xlu0 %509, %v384
        %v511 = vpop.permute.xlu0 %510
        %514 = vset.pattern.permute.xlu0 0
        %515 = vperm.xlu0 %514, %v385
        %v516 = vpop.permute.xlu0 %515
        %519 = vset.pattern.permute.xlu0 0
        %520 = vperm.xlu0 %519, %v386
        %v521 = vpop.permute.xlu0 %520
        %524 = vset.pattern.permute.xlu0 0
        %525 = vperm.xlu0 %524, %v387
        %v526 = vpop.permute.xlu0 %525
        %529 = vset.pattern.permute.xlu0 0
        %530 = vperm.xlu0 %529, %v388
        %v531 = vpop.permute.xlu0 %530
        %534 = vset.pattern.permute.xlu0 0
        %535 = vperm.xlu0 %534, %v389
        %v536 = vpop.permute.xlu0 %535
        %539 = vset.pattern.permute.xlu0 0
        %540 = vperm.xlu0 %539, %v390
        %v541 = vpop.permute.xlu0 %540
        %544 = vset.pattern.permute.xlu0 0
        %545 = vperm.xlu0 %544, %v391
        %v546 = vpop.permute.xlu0 %545
        %549 = vset.pattern.permute.xlu0 0
        %550 = vperm.xlu0 %549, %v392
        %v551 = vpop.permute.xlu0 %550
        %v585 = vunpack.c.l.b16 %v329
        %v586 = vunpack.c.l.b16 %v330
        %v587 = vunpack.c.l.b16 %v331
        %v588 = vunpack.c.l.b16 %v332
        %v589 = vunpack.c.l.b16 %v333
        %v590 = vunpack.c.l.b16 %v334
        %v591 = vunpack.c.l.b16 %v335
        %v592 = vunpack.c.l.b16 %v336
        %v593 = vunpack.c.l.b16 %v337
        %v594 = vunpack.c.l.b16 %v338
        %v595 = vunpack.c.l.b16 %v339
        %v596 = vunpack.c.l.b16 %v340
        %v597 = vunpack.c.l.b16 %v341
        %v598 = vunpack.c.l.b16 %v342
        %v599 = vunpack.c.l.b16 %v343
        %v600 = vunpack.c.l.b16 %v344
        %v601 = vunpack.c.l.b16 %v345
        %v602 = vunpack.c.l.b16 %v346
        %v603 = vunpack.c.l.b16 %v347
        %v604 = vunpack.c.l.b16 %v348
        %v605 = vunpack.c.l.b16 %v349
        %v606 = vunpack.c.l.b16 %v350
        %v607 = vunpack.c.l.b16 %v351
        %v608 = vunpack.c.l.b16 %v352
        %v609 = vunpack.c.l.b16 %v353
        %v610 = vunpack.c.l.b16 %v354
        %v611 = vunpack.c.l.b16 %v355
        %v612 = vunpack.c.l.b16 %v356
        %v613 = vunpack.c.l.b16 %v357
        %v614 = vunpack.c.l.b16 %v358
        %v615 = vunpack.c.l.b16 %v359
        %v616 = vunpack.c.l.b16 %v360
        %v617 = vpack.c.b16 %v586, %v585
        %v618 = vpack.c.b16 %v588, %v587
        %v619 = vpack.c.b16 %v590, %v589
        %v620 = vpack.c.b16 %v592, %v591
        %v621 = vpack.c.b16 %v594, %v593
        %v622 = vpack.c.b16 %v596, %v595
        %v623 = vpack.c.b16 %v598, %v597
        %v624 = vpack.c.b16 %v600, %v599
        %v625 = vpack.c.b16 %v602, %v601
        %v626 = vpack.c.b16 %v604, %v603
        %v627 = vpack.c.b16 %v606, %v605
        %v628 = vpack.c.b16 %v608, %v607
        %v629 = vpack.c.b16 %v610, %v609
        %v630 = vpack.c.b16 %v612, %v611
        %v631 = vpack.c.b16 %v614, %v613
        %v632 = vpack.c.b16 %v616, %v615
        %vm633 = vcmask 261120
        %v635 = vsel %vm633, %v617, 0
        %v638 = vsel %vm633, %v618, 0
        %v641 = vsel %vm633, %v619, 0
        %v644 = vsel %vm633, %v620, 0
        %v647 = vsel %vm633, %v621, 0
        %v650 = vsel %vm633, %v622, 0
        %v653 = vsel %vm633, %v623, 0
        %v656 = vsel %vm633, %v624, 0
        %v659 = vsel %vm633, %v625, 0
        %v662 = vsel %vm633, %v626, 0
        %v665 = vsel %vm633, %v627, 0
        %v668 = vsel %vm633, %v628, 0
        %v671 = vsel %vm633, %v629, 0
        %v674 = vsel %vm633, %v630, 0
        %v677 = vsel %vm633, %v631, 0
        %v680 = vsel %vm633, %v632, 0
        %v683 = vsel %vm633, %v313, 0
        %v686 = vsel %vm633, %v314, 0
        %v689 = vsel %vm633, %v315, 0
        %v692 = vsel %vm633, %v316, 0
        %v695 = vsel %vm633, %v317, 0
        %v698 = vsel %vm633, %v318, 0
        %v701 = vsel %vm633, %v319, 0
        %v704 = vsel %vm633, %v320, 0
        %v707 = vsel %vm633, %v321, 0
        %v710 = vsel %vm633, %v322, 0
        %v713 = vsel %vm633, %v323, 0
        %v716 = vsel %vm633, %v324, 0
        %v719 = vsel %vm633, %v325, 0
        %v722 = vsel %vm633, %v326, 0
        %v725 = vsel %vm633, %v327, 0
        %v728 = vsel %vm633, %v328, 0
        %730 = vmatprep.subr.bf16.mxu0 0
        %731 = vmatpush1.bf16.xpose.msra.mxu0 %v704
        %732 = vmatprep.subr.bf16.mxu0 0
        %733 = vmatpush1.bf16.xpose.msra.mxu0 %v701
        %734 = vmatprep.subr.bf16.mxu0 0
        %735 = vmatpush1.bf16.xpose.msra.mxu0 %v698
        %736 = vmatprep.subr.bf16.mxu0 0
        %737 = vmatpush1.bf16.xpose.msra.mxu0 %v695
        %738 = vmatprep.subr.bf16.mxu0 0
        %739 = vmatpush1.bf16.xpose.msra.mxu0 %v692
        %740 = vmatprep.subr.bf16.mxu0 0
        %741 = vmatpush1.bf16.xpose.msra.mxu0 %v689
        %742 = vmatprep.subr.bf16.mxu0 0
        %743 = vmatpush1.bf16.xpose.msra.mxu0 %v686
        %744 = vmatprep.subr.bf16.mxu0 0
        %745 = vmatpush1.bf16.xpose.msra.mxu0 %v683
        %746 = vmatprep.subr.bf16.mxu0 0
        %747 = vmatpush2.bf16.xpose.msra.mxu0 %v728
        %748 = vmatprep.subr.bf16.mxu0 0
        %749 = vmatpush2.bf16.xpose.msra.mxu0 %v725
        %750 = vmatprep.subr.bf16.mxu0 0
        %751 = vmatpush2.bf16.xpose.msra.mxu0 %v722
        %752 = vmatprep.subr.bf16.mxu0 0
        %753 = vmatpush2.bf16.xpose.msra.mxu0 %v719
        %754 = vmatprep.subr.bf16.mxu0 0
        %755 = vmatpush2.bf16.xpose.msra.mxu0 %v716
        %756 = vmatprep.subr.bf16.mxu0 0
        %757 = vmatpush2.bf16.xpose.msra.mxu0 %v713
        %758 = vmatprep.subr.bf16.mxu0 0
        %759 = vmatpush2.bf16.xpose.msra.mxu0 %v710
        %760 = vmatprep.subr.bf16.mxu0 0
        %761 = vmatpush2.bf16.xpose.msra.mxu0 %v707
        %762 = vmatprep.mubr.bf16.mxu0 0
        %763 = vmatmul.mubr.bf16.gmra.mxu0 %v635
        %v764 = vpop.f32.mrf.mxu0
        %v765 = vadd.f32 %v396, %v764
        %v766 = vpop.f32.mrf.mxu0
        %v767 = vadd.f32 %v396, %v766
        %v768 = vpop.f32.mrf.mxu0
        %v769 = vadd.f32 %v401, %v768
        %v770 = vpop.f32.mrf.mxu0
        %v771 = vadd.f32 %v401, %v770
        %772 = vmatprep.mubr.bf16.mxu0 0
        %773 = vmatmul.mubr.bf16.gmra.mxu0 %v638
        %v774 = vpop.f32.mrf.mxu0
        %v775 = vadd.f32 %v406, %v774
        %v776 = vpop.f32.mrf.mxu0
        %v777 = vadd.f32 %v406, %v776
        %v778 = vpop.f32.mrf.mxu0
        %v779 = vadd.f32 %v411, %v778
        %v780 = vpop.f32.mrf.mxu0
        %v781 = vadd.f32 %v411, %v780
        %782 = vmatprep.mubr.bf16.mxu0 0
        %783 = vmatmul.mubr.bf16.gmra.mxu0 %v641
        %v784 = vpop.f32.mrf.mxu0
        %v785 = vadd.f32 %v416, %v784
        %v786 = vpop.f32.mrf.mxu0
        %v787 = vadd.f32 %v416, %v786
        %v788 = vpop.f32.mrf.mxu0
        %v789 = vadd.f32 %v421, %v788
        %v790 = vpop.f32.mrf.mxu0
        %v791 = vadd.f32 %v421, %v790
        %792 = vmatprep.mubr.bf16.mxu0 0
        %793 = vmatmul.mubr.bf16.gmra.mxu0 %v644
        %v794 = vpop.f32.mrf.mxu0
        %v795 = vadd.f32 %v426, %v794
        %v796 = vpop.f32.mrf.mxu0
        %v797 = vadd.f32 %v426, %v796
        %v798 = vpop.f32.mrf.mxu0
        %v799 = vadd.f32 %v431, %v798
        %v800 = vpop.f32.mrf.mxu0
        %v801 = vadd.f32 %v431, %v800
        %802 = vmatprep.mubr.bf16.mxu0 0
        %803 = vmatmul.mubr.bf16.gmra.mxu0 %v647
        %v804 = vpop.f32.mrf.mxu0
        %v805 = vadd.f32 %v436, %v804
        %v806 = vpop.f32.mrf.mxu0
        %v807 = vadd.f32 %v436, %v806
        %v808 = vpop.f32.mrf.mxu0
        %v809 = vadd.f32 %v441, %v808
        %v810 = vpop.f32.mrf.mxu0
        %v811 = vadd.f32 %v441, %v810
        %812 = vmatprep.mubr.bf16.mxu0 0
        %813 = vmatmul.mubr.bf16.gmra.mxu0 %v650
        %v814 = vpop.f32.mrf.mxu0
        %v815 = vadd.f32 %v446, %v814
        %v816 = vpop.f32.mrf.mxu0
        %v817 = vadd.f32 %v446, %v816
        %v818 = vpop.f32.mrf.mxu0
        %v819 = vadd.f32 %v451, %v818
        %v820 = vpop.f32.mrf.mxu0
        %v821 = vadd.f32 %v451, %v820
        %822 = vmatprep.mubr.bf16.mxu0 0
        %823 = vmatmul.mubr.bf16.gmra.mxu0 %v653
        %v824 = vpop.f32.mrf.mxu0
        %v825 = vadd.f32 %v456, %v824
        %v826 = vpop.f32.mrf.mxu0
        %v827 = vadd.f32 %v456, %v826
        %v828 = vpop.f32.mrf.mxu0
        %v829 = vadd.f32 %v461, %v828
        %v830 = vpop.f32.mrf.mxu0
        %v831 = vadd.f32 %v461, %v830
        %832 = vmatprep.mubr.bf16.mxu0 0
        %833 = vmatmul.mubr.bf16.gmra.mxu0 %v656
        %v834 = vpop.f32.mrf.mxu0
        %v835 = vadd.f32 %v466, %v834
        %v836 = vpop.f32.mrf.mxu0
        %v837 = vadd.f32 %v466, %v836
        %v838 = vpop.f32.mrf.mxu0
        %v839 = vadd.f32 %v471, %v838
        %v840 = vpop.f32.mrf.mxu0
        %v841 = vadd.f32 %v471, %v840
        %842 = vmatprep.mubr.bf16.mxu0 0
        %843 = vmatmul.mubr.bf16.gmra.mxu0 %v659
        %v844 = vpop.f32.mrf.mxu0
        %v845 = vadd.f32 %v476, %v844
        %v846 = vpop.f32.mrf.mxu0
        %v847 = vadd.f32 %v476, %v846
        %v848 = vpop.f32.mrf.mxu0
        %v849 = vadd.f32 %v481, %v848
        %v850 = vpop.f32.mrf.mxu0
        %v851 = vadd.f32 %v481, %v850
        %852 = vmatprep.mubr.bf16.mxu0 0
        %853 = vmatmul.mubr.bf16.gmra.mxu0 %v662
        %v854 = vpop.f32.mrf.mxu0
        %v855 = vadd.f32 %v486, %v854
        %v856 = vpop.f32.mrf.mxu0
        %v857 = vadd.f32 %v486, %v856
        %v858 = vpop.f32.mrf.mxu0
        %v859 = vadd.f32 %v491, %v858
        %v860 = vpop.f32.mrf.mxu0
        %v861 = vadd.f32 %v491, %v860
        %862 = vmatprep.mubr.bf16.mxu0 0
        %863 = vmatmul.mubr.bf16.gmra.mxu0 %v665
        %v864 = vpop.f32.mrf.mxu0
        %v865 = vadd.f32 %v496, %v864
        %v866 = vpop.f32.mrf.mxu0
        %v867 = vadd.f32 %v496, %v866
        %v868 = vpop.f32.mrf.mxu0
        %v869 = vadd.f32 %v501, %v868
        %v870 = vpop.f32.mrf.mxu0
        %v871 = vadd.f32 %v501, %v870
        %872 = vmatprep.mubr.bf16.mxu0 0
        %873 = vmatmul.mubr.bf16.gmra.mxu0 %v668
        %v874 = vpop.f32.mrf.mxu0
        %v875 = vadd.f32 %v506, %v874
        %v876 = vpop.f32.mrf.mxu0
        %v877 = vadd.f32 %v506, %v876
        %v878 = vpop.f32.mrf.mxu0
        %v879 = vadd.f32 %v511, %v878
        %v880 = vpop.f32.mrf.mxu0
        %v881 = vadd.f32 %v511, %v880
        %882 = vmatprep.mubr.bf16.mxu0 0
        %883 = vmatmul.mubr.bf16.gmra.mxu0 %v671
        %v884 = vpop.f32.mrf.mxu0
        %v885 = vadd.f32 %v516, %v884
        %v886 = vpop.f32.mrf.mxu0
        %v887 = vadd.f32 %v516, %v886
        %v888 = vpop.f32.mrf.mxu0
        %v889 = vadd.f32 %v521, %v888
        %v890 = vpop.f32.mrf.mxu0
        %v891 = vadd.f32 %v521, %v890
        %892 = vmatprep.mubr.bf16.mxu0 0
        %893 = vmatmul.mubr.bf16.gmra.mxu0 %v674
        %v894 = vpop.f32.mrf.mxu0
        %v895 = vadd.f32 %v526, %v894
        %v896 = vpop.f32.mrf.mxu0
        %v897 = vadd.f32 %v526, %v896
        %v898 = vpop.f32.mrf.mxu0
        %v899 = vadd.f32 %v531, %v898
        %v900 = vpop.f32.mrf.mxu0
        %v901 = vadd.f32 %v531, %v900
        %902 = vmatprep.mubr.bf16.mxu0 0
        %903 = vmatmul.mubr.bf16.gmra.mxu0 %v677
        %v904 = vpop.f32.mrf.mxu0
        %v905 = vadd.f32 %v536, %v904
        %v906 = vpop.f32.mrf.mxu0
        %v907 = vadd.f32 %v536, %v906
        %v908 = vpop.f32.mrf.mxu0
        %v909 = vadd.f32 %v541, %v908
        %v910 = vpop.f32.mrf.mxu0
        %v911 = vadd.f32 %v541, %v910
        %912 = vmatprep.mubr.bf16.mxu0 0
        %913 = vmatmul.mubr.bf16.gmra.mxu0 %v680
        %v914 = vpop.f32.mrf.mxu0
        %v915 = vadd.f32 %v546, %v914
        %v916 = vpop.f32.mrf.mxu0
        %v917 = vadd.f32 %v546, %v916
        %v918 = vpop.f32.mrf.mxu0
        %v919 = vadd.f32 %v551, %v918
        %v920 = vpop.f32.mrf.mxu0
        %v921 = vadd.f32 %v551, %v920
        %922 = vdwg.mxu0
        %v923 = vmax.f32 %v765, 0.0
        %v924 = vmax.f32 %v767, 0.0
        %v925 = vmax.f32 %v769, 0.0
        %v926 = vmax.f32 %v771, 0.0
        %v927 = vmax.f32 %v775, 0.0
        %v928 = vmax.f32 %v777, 0.0
        %v929 = vmax.f32 %v779, 0.0
        %v930 = vmax.f32 %v781, 0.0
        %v931 = vmax.f32 %v785, 0.0
        %v932 = vmax.f32 %v787, 0.0
        %v933 = vmax.f32 %v789, 0.0
        %v934 = vmax.f32 %v791, 0.0
        %v935 = vmax.f32 %v795, 0.0
        %v936 = vmax.f32 %v797, 0.0
        %v937 = vmax.f32 %v799, 0.0
        %v938 = vmax.f32 %v801, 0.0
        %v939 = vmax.f32 %v805, 0.0
        %v940 = vmax.f32 %v807, 0.0
        %v941 = vmax.f32 %v809, 0.0
        %v942 = vmax.f32 %v811, 0.0
        %v943 = vmax.f32 %v815, 0.0
        %v944 = vmax.f32 %v817, 0.0
        %v945 = vmax.f32 %v819, 0.0
        %v946 = vmax.f32 %v821, 0.0
        %v947 = vmax.f32 %v825, 0.0
        %v948 = vmax.f32 %v827, 0.0
        %v949 = vmax.f32 %v829, 0.0
        %v950 = vmax.f32 %v831, 0.0
        %v951 = vmax.f32 %v835, 0.0
        %v952 = vmax.f32 %v837, 0.0
        %v953 = vmax.f32 %v839, 0.0
        %v954 = vmax.f32 %v841, 0.0
        %v955 = vmax.f32 %v845, 0.0
        %v956 = vmax.f32 %v847, 0.0
        %v957 = vmax.f32 %v849, 0.0
        %v958 = vmax.f32 %v851, 0.0
        %v959 = vmax.f32 %v855, 0.0
        %v960 = vmax.f32 %v857, 0.0
        %v961 = vmax.f32 %v859, 0.0
        %v962 = vmax.f32 %v861, 0.0
        %v963 = vmax.f32 %v865, 0.0
        %v964 = vmax.f32 %v867, 0.0
        %v965 = vmax.f32 %v869, 0.0
        %v966 = vmax.f32 %v871, 0.0
        %v967 = vmax.f32 %v875, 0.0
        %v968 = vmax.f32 %v877, 0.0
        %v969 = vmax.f32 %v879, 0.0
        %v970 = vmax.f32 %v881, 0.0
        %v971 = vmax.f32 %v885, 0.0
        %v972 = vmax.f32 %v887, 0.0
        %v973 = vmax.f32 %v889, 0.0
        %v974 = vmax.f32 %v891, 0.0
        %v975 = vmax.f32 %v895, 0.0
        %v976 = vmax.f32 %v897, 0.0
        %v977 = vmax.f32 %v899, 0.0
        %v978 = vmax.f32 %v901, 0.0
        %v979 = vmax.f32 %v905, 0.0
        %v980 = vmax.f32 %v907, 0.0
        %v981 = vmax.f32 %v909, 0.0
        %v982 = vmax.f32 %v911, 0.0
        %v983 = vmax.f32 %v915, 0.0
        %v984 = vmax.f32 %v917, 0.0
        %v985 = vmax.f32 %v919, 0.0
        %v986 = vmax.f32 %v921, 0.0
        %v987 = vld [vmem:[%s3] sm:$0xff]
        %v988 = vld [vmem:[%s3 + $0x8] sm:$0xff]
        %v989 = vld [vmem:[%s3 + $0x10] sm:$0xff]
        %v990 = vld [vmem:[%s3 + $0x18] sm:$0xff]
        %v991 = vld [vmem:[%s3 + $0x20] sm:$0xff]
        %v992 = vld [vmem:[%s3 + $0x28] sm:$0xff]
        %v993 = vld [vmem:[%s3 + $0x30] sm:$0xff]
        %v994 = vld [vmem:[%s3 + $0x38] sm:$0xff]
        %v995 = vld [vmem:[%s3 + $0x40] sm:$0xff]
        %v996 = vld [vmem:[%s3 + $0x48] sm:$0xff]
        %v997 = vld [vmem:[%s3 + $0x50] sm:$0xff]
        %v998 = vld [vmem:[%s3 + $0x58] sm:$0xff]
        %v999 = vld [vmem:[%s3 + $0x60] sm:$0xff]
        %v1000 = vld [vmem:[%s3 + $0x68] sm:$0xff]
        %v1001 = vld [vmem:[%s3 + $0x70] sm:$0xff]
        %v1002 = vld [vmem:[%s3 + $0x78] sm:$0xff]
        %v1003 = vld [vmem:[%s3 + $0x80] sm:$0xff]
        %v1004 = vld [vmem:[%s3 + $0x88] sm:$0xff]
        %v1005 = vld [vmem:[%s3 + $0x90] sm:$0xff]
        %v1006 = vld [vmem:[%s3 + $0x98] sm:$0xff]
        %v1007 = vld [vmem:[%s3 + $0xa0] sm:$0xff]
        %v1008 = vld [vmem:[%s3 + $0xa8] sm:$0xff]
        %v1009 = vld [vmem:[%s3 + $0xb0] sm:$0xff]
        %v1010 = vld [vmem:[%s3 + $0xb8] sm:$0xff]
        %v1011 = vld [vmem:[%s3 + $0xc0] sm:$0xff]
        %v1012 = vld [vmem:[%s3 + $0xc8] sm:$0xff]
        %v1013 = vld [vmem:[%s3 + $0xd0] sm:$0xff]
        %v1014 = vld [vmem:[%s3 + $0xd8] sm:$0xff]
        %v1015 = vld [vmem:[%s3 + $0xe0] sm:$0xff]
        %v1016 = vld [vmem:[%s3 + $0xe8] sm:$0xff]
        %v1017 = vld [vmem:[%s3 + $0xf0] sm:$0xff]
        %v1018 = vld [vmem:[%s3 + $0xf8] sm:$0xff]
        %v1019 = vpack.c.bf16 %v925, %v923
        %v1020 = vpack.c.bf16 %v926, %v924
        %v1021 = vpack.c.bf16 %v929, %v927
        %v1022 = vpack.c.bf16 %v930, %v928
        %v1023 = vpack.c.bf16 %v933, %v931
        %v1024 = vpack.c.bf16 %v934, %v932
        %v1025 = vpack.c.bf16 %v937, %v935
        %v1026 = vpack.c.bf16 %v938, %v936
        %v1027 = vpack.c.bf16 %v941, %v939
        %v1028 = vpack.c.bf16 %v942, %v940
        %v1029 = vpack.c.bf16 %v945, %v943
        %v1030 = vpack.c.bf16 %v946, %v944
        %v1031 = vpack.c.bf16 %v949, %v947
        %v1032 = vpack.c.bf16 %v950, %v948
        %v1033 = vpack.c.bf16 %v953, %v951
        %v1034 = vpack.c.bf16 %v954, %v952
        %v1035 = vpack.c.bf16 %v957, %v955
        %v1036 = vpack.c.bf16 %v958, %v956
        %v1037 = vpack.c.bf16 %v961, %v959
        %v1038 = vpack.c.bf16 %v962, %v960
        %v1039 = vpack.c.bf16 %v965, %v963
        %v1040 = vpack.c.bf16 %v966, %v964
        %v1041 = vpack.c.bf16 %v969, %v967
        %v1042 = vpack.c.bf16 %v970, %v968
        %v1043 = vpack.c.bf16 %v973, %v971
        %v1044 = vpack.c.bf16 %v974, %v972
        %v1045 = vpack.c.bf16 %v977, %v975
        %v1046 = vpack.c.bf16 %v978, %v976
        %v1047 = vpack.c.bf16 %v981, %v979
        %v1048 = vpack.c.bf16 %v982, %v980
        %v1049 = vpack.c.bf16 %v985, %v983
        %v1050 = vpack.c.bf16 %v986, %v984
        %v1051 = vld [vmem:[%s4] sm:$0xff]
        %v1052 = vld [vmem:[%s4 + $0x8] sm:$0xff]
        %v1053 = vld [vmem:[%s4 + $0x10] sm:$0xff]
        %v1054 = vld [vmem:[%s4 + $0x18] sm:$0xff]
        %v1055 = vld [vmem:[%s4 + $0x20] sm:$0xff]
        %v1056 = vld [vmem:[%s4 + $0x28] sm:$0xff]
        %v1057 = vld [vmem:[%s4 + $0x30] sm:$0xff]
        %v1058 = vld [vmem:[%s4 + $0x38] sm:$0xff]
        %v1059 = vld [vmem:[%s4 + $0x40] sm:$0xff]
        %v1060 = vld [vmem:[%s4 + $0x48] sm:$0xff]
        %v1061 = vld [vmem:[%s4 + $0x50] sm:$0xff]
        %v1062 = vld [vmem:[%s4 + $0x58] sm:$0xff]
        %v1063 = vld [vmem:[%s4 + $0x60] sm:$0xff]
        %v1064 = vld [vmem:[%s4 + $0x68] sm:$0xff]
        %v1065 = vld [vmem:[%s4 + $0x70] sm:$0xff]
        %v1066 = vld [vmem:[%s4 + $0x78] sm:$0xff]
        %v1067 = vld [vmem:[%s4 + $0x80] sm:$0xff]
        %v1068 = vld [vmem:[%s4 + $0x88] sm:$0xff]
        %v1069 = vld [vmem:[%s4 + $0x90] sm:$0xff]
        %v1070 = vld [vmem:[%s4 + $0x98] sm:$0xff]
        %v1071 = vld [vmem:[%s4 + $0xa0] sm:$0xff]
        %v1072 = vld [vmem:[%s4 + $0xa8] sm:$0xff]
        %v1073 = vld [vmem:[%s4 + $0xb0] sm:$0xff]
        %v1074 = vld [vmem:[%s4 + $0xb8] sm:$0xff]
        %v1075 = vld [vmem:[%s4 + $0xc0] sm:$0xff]
        %v1076 = vld [vmem:[%s4 + $0xc8] sm:$0xff]
        %v1077 = vld [vmem:[%s4 + $0xd0] sm:$0xff]
        %v1078 = vld [vmem:[%s4 + $0xd8] sm:$0xff]
        %v1079 = vld [vmem:[%s4 + $0xe0] sm:$0xff]
        %v1080 = vld [vmem:[%s4 + $0xe8] sm:$0xff]
        %v1081 = vld [vmem:[%s4 + $0xf0] sm:$0xff]
        %v1082 = vld [vmem:[%s4 + $0xf8] sm:$0xff]
        %1084 = vset.pattern.permute.xlu0 0
        %1085 = vperm.xlu0 %1084, %v1051
        %v1086 = vpop.permute.xlu0 %1085
        %1089 = vset.pattern.permute.xlu0 0
        %1090 = vperm.xlu0 %1089, %v1052
        %v1091 = vpop.permute.xlu0 %1090
        %1094 = vset.pattern.permute.xlu0 0
        %1095 = vperm.xlu0 %1094, %v1053
        %v1096 = vpop.permute.xlu0 %1095
        %1099 = vset.pattern.permute.xlu0 0
        %1100 = vperm.xlu0 %1099, %v1054
        %v1101 = vpop.permute.xlu0 %1100
        %1104 = vset.pattern.permute.xlu0 0
        %1105 = vperm.xlu0 %1104, %v1055
        %v1106 = vpop.permute.xlu0 %1105
        %1109 = vset.pattern.permute.xlu0 0
        %1110 = vperm.xlu0 %1109, %v1056
        %v1111 = vpop.permute.xlu0 %1110
        %1114 = vset.pattern.permute.xlu0 0
        %1115 = vperm.xlu0 %1114, %v1057
        %v1116 = vpop.permute.xlu0 %1115
        %1119 = vset.pattern.permute.xlu0 0
        %1120 = vperm.xlu0 %1119, %v1058
        %v1121 = vpop.permute.xlu0 %1120
        %1124 = vset.pattern.permute.xlu0 0
        %1125 = vperm.xlu0 %1124, %v1059
        %v1126 = vpop.permute.xlu0 %1125
        %1129 = vset.pattern.permute.xlu0 0
        %1130 = vperm.xlu0 %1129, %v1060
        %v1131 = vpop.permute.xlu0 %1130
        %1134 = vset.pattern.permute.xlu0 0
        %1135 = vperm.xlu0 %1134, %v1061
        %v1136 = vpop.permute.xlu0 %1135
        %1139 = vset.pattern.permute.xlu0 0
        %1140 = vperm.xlu0 %1139, %v1062
        %v1141 = vpop.permute.xlu0 %1140
        %1144 = vset.pattern.permute.xlu0 0
        %1145 = vperm.xlu0 %1144, %v1063
        %v1146 = vpop.permute.xlu0 %1145
        %1149 = vset.pattern.permute.xlu0 0
        %1150 = vperm.xlu0 %1149, %v1064
        %v1151 = vpop.permute.xlu0 %1150
        %1154 = vset.pattern.permute.xlu0 0
        %1155 = vperm.xlu0 %1154, %v1065
        %v1156 = vpop.permute.xlu0 %1155
        %1159 = vset.pattern.permute.xlu0 0
        %1160 = vperm.xlu0 %1159, %v1066
        %v1161 = vpop.permute.xlu0 %1160
        %1164 = vset.pattern.permute.xlu0 0
        %1165 = vperm.xlu0 %1164, %v1067
        %v1166 = vpop.permute.xlu0 %1165
        %1169 = vset.pattern.permute.xlu0 0
        %1170 = vperm.xlu0 %1169, %v1068
        %v1171 = vpop.permute.xlu0 %1170
        %1174 = vset.pattern.permute.xlu0 0
        %1175 = vperm.xlu0 %1174, %v1069
        %v1176 = vpop.permute.xlu0 %1175
        %1179 = vset.pattern.permute.xlu0 0
        %1180 = vperm.xlu0 %1179, %v1070
        %v1181 = vpop.permute.xlu0 %1180
        %1184 = vset.pattern.permute.xlu0 0
        %1185 = vperm.xlu0 %1184, %v1071
        %v1186 = vpop.permute.xlu0 %1185
        %1189 = vset.pattern.permute.xlu0 0
        %1190 = vperm.xlu0 %1189, %v1072
        %v1191 = vpop.permute.xlu0 %1190
        %1194 = vset.pattern.permute.xlu0 0
        %1195 = vperm.xlu0 %1194, %v1073
        %v1196 = vpop.permute.xlu0 %1195
        %1199 = vset.pattern.permute.xlu0 0
        %1200 = vperm.xlu0 %1199, %v1074
        %v1201 = vpop.permute.xlu0 %1200
        %1204 = vset.pattern.permute.xlu0 0
        %1205 = vperm.xlu0 %1204, %v1075
        %v1206 = vpop.permute.xlu0 %1205
        %1209 = vset.pattern.permute.xlu0 0
        %1210 = vperm.xlu0 %1209, %v1076
        %v1211 = vpop.permute.xlu0 %1210
        %1214 = vset.pattern.permute.xlu0 0
        %1215 = vperm.xlu0 %1214, %v1077
        %v1216 = vpop.permute.xlu0 %1215
        %1219 = vset.pattern.permute.xlu0 0
        %1220 = vperm.xlu0 %1219, %v1078
        %v1221 = vpop.permute.xlu0 %1220
        %1224 = vset.pattern.permute.xlu0 0
        %1225 = vperm.xlu0 %1224, %v1079
        %v1226 = vpop.permute.xlu0 %1225
        %1229 = vset.pattern.permute.xlu0 0
        %1230 = vperm.xlu0 %1229, %v1080
        %v1231 = vpop.permute.xlu0 %1230
        %1234 = vset.pattern.permute.xlu0 0
        %1235 = vperm.xlu0 %1234, %v1081
        %v1236 = vpop.permute.xlu0 %1235
        %1239 = vset.pattern.permute.xlu0 0
        %1240 = vperm.xlu0 %1239, %v1082
        %v1241 = vpop.permute.xlu0 %1240
        %v1275 = vunpack.c.l.b16 %v987
        %v1276 = vunpack.c.h.b16 %v987
        %v1277 = vunpack.c.l.b16 %v988
        %v1278 = vunpack.c.h.b16 %v988
        %v1279 = vunpack.c.l.b16 %v989
        %v1280 = vunpack.c.h.b16 %v989
        %v1281 = vunpack.c.l.b16 %v990
        %v1282 = vunpack.c.h.b16 %v990
        %v1283 = vunpack.c.l.b16 %v991
        %v1284 = vunpack.c.h.b16 %v991
        %v1285 = vunpack.c.l.b16 %v992
        %v1286 = vunpack.c.h.b16 %v992
        %v1287 = vunpack.c.l.b16 %v993
        %v1288 = vunpack.c.h.b16 %v993
        %v1289 = vunpack.c.l.b16 %v994
        %v1290 = vunpack.c.h.b16 %v994
        %v1291 = vunpack.c.l.b16 %v995
        %v1292 = vunpack.c.h.b16 %v995
        %v1293 = vunpack.c.l.b16 %v996
        %v1294 = vunpack.c.h.b16 %v996
        %v1295 = vunpack.c.l.b16 %v997
        %v1296 = vunpack.c.h.b16 %v997
        %v1297 = vunpack.c.l.b16 %v998
        %v1298 = vunpack.c.h.b16 %v998
        %v1299 = vunpack.c.l.b16 %v999
        %v1300 = vunpack.c.h.b16 %v999
        %v1301 = vunpack.c.l.b16 %v1000
        %v1302 = vunpack.c.h.b16 %v1000
        %v1303 = vunpack.c.l.b16 %v1001
        %v1304 = vunpack.c.h.b16 %v1001
        %v1305 = vunpack.c.l.b16 %v1002
        %v1306 = vunpack.c.h.b16 %v1002
        %v1307 = vunpack.c.l.b16 %v1003
        %v1308 = vunpack.c.h.b16 %v1003
        %v1309 = vunpack.c.l.b16 %v1004
        %v1310 = vunpack.c.h.b16 %v1004
        %v1311 = vunpack.c.l.b16 %v1005
        %v1312 = vunpack.c.h.b16 %v1005
        %v1313 = vunpack.c.l.b16 %v1006
        %v1314 = vunpack.c.h.b16 %v1006
        %v1315 = vunpack.c.l.b16 %v1007
        %v1316 = vunpack.c.h.b16 %v1007
        %v1317 = vunpack.c.l.b16 %v1008
        %v1318 = vunpack.c.h.b16 %v1008
        %v1319 = vunpack.c.l.b16 %v1009
        %v1320 = vunpack.c.h.b16 %v1009
        %v1321 = vunpack.c.l.b16 %v1010
        %v1322 = vunpack.c.h.b16 %v1010
        %v1323 = vunpack.c.l.b16 %v1011
        %v1324 = vunpack.c.h.b16 %v1011
        %v1325 = vunpack.c.l.b16 %v1012
        %v1326 = vunpack.c.h.b16 %v1012
        %v1327 = vunpack.c.l.b16 %v1013
        %v1328 = vunpack.c.h.b16 %v1013
        %v1329 = vunpack.c.l.b16 %v1014
        %v1330 = vunpack.c.h.b16 %v1014
        %v1331 = vunpack.c.l.b16 %v1015
        %v1332 = vunpack.c.h.b16 %v1015
        %v1333 = vunpack.c.l.b16 %v1016
        %v1334 = vunpack.c.h.b16 %v1016
        %v1335 = vunpack.c.l.b16 %v1017
        %v1336 = vunpack.c.h.b16 %v1017
        %v1337 = vunpack.c.l.b16 %v1018
        %v1338 = vunpack.c.h.b16 %v1018
        %v1339 = vpack.c.b16 %v1277, %v1275
        %v1340 = vpack.c.b16 %v1278, %v1276
        %v1341 = vpack.c.b16 %v1281, %v1279
        %v1342 = vpack.c.b16 %v1282, %v1280
        %v1343 = vpack.c.b16 %v1285, %v1283
        %v1344 = vpack.c.b16 %v1286, %v1284
        %v1345 = vpack.c.b16 %v1289, %v1287
        %v1346 = vpack.c.b16 %v1290, %v1288
        %v1347 = vpack.c.b16 %v1293, %v1291
        %v1348 = vpack.c.b16 %v1294, %v1292
        %v1349 = vpack.c.b16 %v1297, %v1295
        %v1350 = vpack.c.b16 %v1298, %v1296
        %v1351 = vpack.c.b16 %v1301, %v1299
        %v1352 = vpack.c.b16 %v1302, %v1300
        %v1353 = vpack.c.b16 %v1305, %v1303
        %v1354 = vpack.c.b16 %v1306, %v1304
        %v1355 = vpack.c.b16 %v1309, %v1307
        %v1356 = vpack.c.b16 %v1310, %v1308
        %v1357 = vpack.c.b16 %v1313, %v1311
        %v1358 = vpack.c.b16 %v1314, %v1312
        %v1359 = vpack.c.b16 %v1317, %v1315
        %v1360 = vpack.c.b16 %v1318, %v1316
        %v1361 = vpack.c.b16 %v1321, %v1319
        %v1362 = vpack.c.b16 %v1322, %v1320
        %v1363 = vpack.c.b16 %v1325, %v1323
        %v1364 = vpack.c.b16 %v1326, %v1324
        %v1365 = vpack.c.b16 %v1329, %v1327
        %v1366 = vpack.c.b16 %v1330, %v1328
        %v1367 = vpack.c.b16 %v1333, %v1331
        %v1368 = vpack.c.b16 %v1334, %v1332
        %v1369 = vpack.c.b16 %v1337, %v1335
        %v1370 = vpack.c.b16 %v1338, %v1336
        %1403 = vmatprep.subr.bf16.mxu0 %v1034
        %1404 = vmatpush1.bf16.msra.mxu0 %v1033
        %1405 = vmatprep.subr.bf16.mxu0 %v1032
        %1406 = vmatpush1.bf16.msra.mxu0 %v1031
        %1407 = vmatprep.subr.bf16.mxu0 %v1030
        %1408 = vmatpush1.bf16.msra.mxu0 %v1029
        %1409 = vmatprep.subr.bf16.mxu0 %v1028
        %1410 = vmatpush1.bf16.msra.mxu0 %v1027
        %1411 = vmatprep.subr.bf16.mxu0 %v1026
        %1412 = vmatpush1.bf16.msra.mxu0 %v1025
        %1413 = vmatprep.subr.bf16.mxu0 %v1024
        %1414 = vmatpush1.bf16.msra.mxu0 %v1023
        %1415 = vmatprep.subr.bf16.mxu0 %v1022
        %1416 = vmatpush1.bf16.msra.mxu0 %v1021
        %1417 = vmatprep.subr.bf16.mxu0 %v1020
        %1418 = vmatpush1.bf16.msra.mxu0 %v1019
        %1419 = vmatprep.subr.bf16.mxu0 %v1050
        %1420 = vmatpush2.bf16.msra.mxu0 %v1049
        %1421 = vmatprep.subr.bf16.mxu0 %v1048
        %1422 = vmatpush2.bf16.msra.mxu0 %v1047
        %1423 = vmatprep.subr.bf16.mxu0 %v1046
        %1424 = vmatpush2.bf16.msra.mxu0 %v1045
        %1425 = vmatprep.subr.bf16.mxu0 %v1044
        %1426 = vmatpush2.bf16.msra.mxu0 %v1043
        %1427 = vmatprep.subr.bf16.mxu0 %v1042
        %1428 = vmatpush2.bf16.msra.mxu0 %v1041
        %1429 = vmatprep.subr.bf16.mxu0 %v1040
        %1430 = vmatpush2.bf16.msra.mxu0 %v1039
        %1431 = vmatprep.subr.bf16.mxu0 %v1038
        %1432 = vmatpush2.bf16.msra.mxu0 %v1037
        %1433 = vmatprep.subr.bf16.mxu0 %v1036
        %1434 = vmatpush2.bf16.msra.mxu0 %v1035
        %1435 = vmatprep.mubr.bf16.mxu0 %v1340
        %1436 = vmatmul.mubr.bf16.gmra.mxu0 %v1339
        %v1437 = vpop.f32.mrf.mxu0
        %v1438 = vadd.f32 %v1086, %v1437
        %v1439 = vpop.f32.mrf.mxu0
        %v1440 = vadd.f32 %v1086, %v1439
        %v1441 = vpop.f32.mrf.mxu0
        %v1442 = vadd.f32 %v1091, %v1441
        %v1443 = vpop.f32.mrf.mxu0
        %v1444 = vadd.f32 %v1091, %v1443
        %1445 = vmatprep.mubr.bf16.mxu0 %v1342
        %1446 = vmatmul.mubr.bf16.gmra.mxu0 %v1341
        %v1447 = vpop.f32.mrf.mxu0
        %v1448 = vadd.f32 %v1096, %v1447
        %v1449 = vpop.f32.mrf.mxu0
        %v1450 = vadd.f32 %v1096, %v1449
        %v1451 = vpop.f32.mrf.mxu0
        %v1452 = vadd.f32 %v1101, %v1451
        %v1453 = vpop.f32.mrf.mxu0
        %v1454 = vadd.f32 %v1101, %v1453
        %1455 = vmatprep.mubr.bf16.mxu0 %v1344
        %1456 = vmatmul.mubr.bf16.gmra.mxu0 %v1343
        %v1457 = vpop.f32.mrf.mxu0
        %v1458 = vadd.f32 %v1106, %v1457
        %v1459 = vpop.f32.mrf.mxu0
        %v1460 = vadd.f32 %v1106, %v1459
        %v1461 = vpop.f32.mrf.mxu0
        %v1462 = vadd.f32 %v1111, %v1461
        %v1463 = vpop.f32.mrf.mxu0
        %v1464 = vadd.f32 %v1111, %v1463
        %1465 = vmatprep.mubr.bf16.mxu0 %v1346
        %1466 = vmatmul.mubr.bf16.gmra.mxu0 %v1345
        %v1467 = vpop.f32.mrf.mxu0
        %v1468 = vadd.f32 %v1116, %v1467
        %v1469 = vpop.f32.mrf.mxu0
        %v1470 = vadd.f32 %v1116, %v1469
        %v1471 = vpop.f32.mrf.mxu0
        %v1472 = vadd.f32 %v1121, %v1471
        %v1473 = vpop.f32.mrf.mxu0
        %v1474 = vadd.f32 %v1121, %v1473
        %1475 = vmatprep.mubr.bf16.mxu0 %v1348
        %1476 = vmatmul.mubr.bf16.gmra.mxu0 %v1347
        %v1477 = vpop.f32.mrf.mxu0
        %v1478 = vadd.f32 %v1126, %v1477
        %v1479 = vpop.f32.mrf.mxu0
        %v1480 = vadd.f32 %v1126, %v1479
        %v1481 = vpop.f32.mrf.mxu0
        %v1482 = vadd.f32 %v1131, %v1481
        %v1483 = vpop.f32.mrf.mxu0
        %v1484 = vadd.f32 %v1131, %v1483
        %1485 = vmatprep.mubr.bf16.mxu0 %v1350
        %1486 = vmatmul.mubr.bf16.gmra.mxu0 %v1349
        %v1487 = vpop.f32.mrf.mxu0
        %v1488 = vadd.f32 %v1136, %v1487
        %v1489 = vpop.f32.mrf.mxu0
        %v1490 = vadd.f32 %v1136, %v1489
        %v1491 = vpop.f32.mrf.mxu0
        %v1492 = vadd.f32 %v1141, %v1491
        %v1493 = vpop.f32.mrf.mxu0
        %v1494 = vadd.f32 %v1141, %v1493
        %1495 = vmatprep.mubr.bf16.mxu0 %v1352
        %1496 = vmatmul.mubr.bf16.gmra.mxu0 %v1351
        %v1497 = vpop.f32.mrf.mxu0
        %v1498 = vadd.f32 %v1146, %v1497
        %v1499 = vpop.f32.mrf.mxu0
        %v1500 = vadd.f32 %v1146, %v1499
        %v1501 = vpop.f32.mrf.mxu0
        %v1502 = vadd.f32 %v1151, %v1501
        %v1503 = vpop.f32.mrf.mxu0
        %v1504 = vadd.f32 %v1151, %v1503
        %1505 = vmatprep.mubr.bf16.mxu0 %v1354
        %1506 = vmatmul.mubr.bf16.gmra.mxu0 %v1353
        %v1507 = vpop.f32.mrf.mxu0
        %v1508 = vadd.f32 %v1156, %v1507
        %v1509 = vpop.f32.mrf.mxu0
        %v1510 = vadd.f32 %v1156, %v1509
        %v1511 = vpop.f32.mrf.mxu0
        %v1512 = vadd.f32 %v1161, %v1511
        %v1513 = vpop.f32.mrf.mxu0
        %v1514 = vadd.f32 %v1161, %v1513
        %1515 = vmatprep.mubr.bf16.mxu0 %v1356
        %1516 = vmatmul.mubr.bf16.gmra.mxu0 %v1355
        %v1517 = vpop.f32.mrf.mxu0
        %v1518 = vadd.f32 %v1166, %v1517
        %v1519 = vpop.f32.mrf.mxu0
        %v1520 = vadd.f32 %v1166, %v1519
        %v1521 = vpop.f32.mrf.mxu0
        %v1522 = vadd.f32 %v1171, %v1521
        %v1523 = vpop.f32.mrf.mxu0
        %v1524 = vadd.f32 %v1171, %v1523
        %1525 = vmatprep.mubr.bf16.mxu0 %v1358
        %1526 = vmatmul.mubr.bf16.gmra.mxu0 %v1357
        %v1527 = vpop.f32.mrf.mxu0
        %v1528 = vadd.f32 %v1176, %v1527
        %v1529 = vpop.f32.mrf.mxu0
        %v1530 = vadd.f32 %v1176, %v1529
        %v1531 = vpop.f32.mrf.mxu0
        %v1532 = vadd.f32 %v1181, %v1531
        %v1533 = vpop.f32.mrf.mxu0
        %v1534 = vadd.f32 %v1181, %v1533
        %1535 = vmatprep.mubr.bf16.mxu0 %v1360
        %1536 = vmatmul.mubr.bf16.gmra.mxu0 %v1359
        %v1537 = vpop.f32.mrf.mxu0
        %v1538 = vadd.f32 %v1186, %v1537
        %v1539 = vpop.f32.mrf.mxu0
        %v1540 = vadd.f32 %v1186, %v1539
        %v1541 = vpop.f32.mrf.mxu0
        %v1542 = vadd.f32 %v1191, %v1541
        %v1543 = vpop.f32.mrf.mxu0
        %v1544 = vadd.f32 %v1191, %v1543
        %1545 = vmatprep.mubr.bf16.mxu0 %v1362
        %1546 = vmatmul.mubr.bf16.gmra.mxu0 %v1361
        %v1547 = vpop.f32.mrf.mxu0
        %v1548 = vadd.f32 %v1196, %v1547
        %v1549 = vpop.f32.mrf.mxu0
        %v1550 = vadd.f32 %v1196, %v1549
        %v1551 = vpop.f32.mrf.mxu0
        %v1552 = vadd.f32 %v1201, %v1551
        %v1553 = vpop.f32.mrf.mxu0
        %v1554 = vadd.f32 %v1201, %v1553
        %1555 = vmatprep.mubr.bf16.mxu0 %v1364
        %1556 = vmatmul.mubr.bf16.gmra.mxu0 %v1363
        %v1557 = vpop.f32.mrf.mxu0
        %v1558 = vadd.f32 %v1206, %v1557
        %v1559 = vpop.f32.mrf.mxu0
        %v1560 = vadd.f32 %v1206, %v1559
        %v1561 = vpop.f32.mrf.mxu0
        %v1562 = vadd.f32 %v1211, %v1561
        %v1563 = vpop.f32.mrf.mxu0
        %v1564 = vadd.f32 %v1211, %v1563
        %1565 = vmatprep.mubr.bf16.mxu0 %v1366
        %1566 = vmatmul.mubr.bf16.gmra.mxu0 %v1365
        %v1567 = vpop.f32.mrf.mxu0
        %v1568 = vadd.f32 %v1216, %v1567
        %v1569 = vpop.f32.mrf.mxu0
        %v1570 = vadd.f32 %v1216, %v1569
        %v1571 = vpop.f32.mrf.mxu0
        %v1572 = vadd.f32 %v1221, %v1571
        %v1573 = vpop.f32.mrf.mxu0
        %v1574 = vadd.f32 %v1221, %v1573
        %1575 = vmatprep.mubr.bf16.mxu0 %v1368
        %1576 = vmatmul.mubr.bf16.gmra.mxu0 %v1367
        %v1577 = vpop.f32.mrf.mxu0
        %v1578 = vadd.f32 %v1226, %v1577
        %v1579 = vpop.f32.mrf.mxu0
        %v1580 = vadd.f32 %v1226, %v1579
        %v1581 = vpop.f32.mrf.mxu0
        %v1582 = vadd.f32 %v1231, %v1581
        %v1583 = vpop.f32.mrf.mxu0
        %v1584 = vadd.f32 %v1231, %v1583
        %1585 = vmatprep.mubr.bf16.mxu0 %v1370
        %1586 = vmatmul.mubr.bf16.gmra.mxu0 %v1369
        %v1587 = vpop.f32.mrf.mxu0
        %v1588 = vadd.f32 %v1236, %v1587
        %v1589 = vpop.f32.mrf.mxu0
        %v1590 = vadd.f32 %v1236, %v1589
        %v1591 = vpop.f32.mrf.mxu0
        %v1592 = vadd.f32 %v1241, %v1591
        %v1593 = vpop.f32.mrf.mxu0
        %v1594 = vadd.f32 %v1241, %v1593
        %1595 = vdwg.mxu0
        %v1596 = vmax.f32 %v1438, 0.0
        %v1597 = vmax.f32 %v1440, 0.0
        %v1598 = vmax.f32 %v1442, 0.0
        %v1599 = vmax.f32 %v1444, 0.0
        %v1600 = vmax.f32 %v1448, 0.0
        %v1601 = vmax.f32 %v1450, 0.0
        %v1602 = vmax.f32 %v1452, 0.0
        %v1603 = vmax.f32 %v1454, 0.0
        %v1604 = vmax.f32 %v1458, 0.0
        %v1605 = vmax.f32 %v1460, 0.0
        %v1606 = vmax.f32 %v1462, 0.0
        %v1607 = vmax.f32 %v1464, 0.0
        %v1608 = vmax.f32 %v1468, 0.0
        %v1609 = vmax.f32 %v1470, 0.0
        %v1610 = vmax.f32 %v1472, 0.0
        %v1611 = vmax.f32 %v1474, 0.0
        %v1612 = vmax.f32 %v1478, 0.0
        %v1613 = vmax.f32 %v1480, 0.0
        %v1614 = vmax.f32 %v1482, 0.0
        %v1615 = vmax.f32 %v1484, 0.0
        %v1616 = vmax.f32 %v1488, 0.0
        %v1617 = vmax.f32 %v1490, 0.0
        %v1618 = vmax.f32 %v1492, 0.0
        %v1619 = vmax.f32 %v1494, 0.0
        %v1620 = vmax.f32 %v1498, 0.0
        %v1621 = vmax.f32 %v1500, 0.0
        %v1622 = vmax.f32 %v1502, 0.0
        %v1623 = vmax.f32 %v1504, 0.0
        %v1624 = vmax.f32 %v1508, 0.0
        %v1625 = vmax.f32 %v1510, 0.0
        %v1626 = vmax.f32 %v1512, 0.0
        %v1627 = vmax.f32 %v1514, 0.0
        %v1628 = vmax.f32 %v1518, 0.0
        %v1629 = vmax.f32 %v1520, 0.0
        %v1630 = vmax.f32 %v1522, 0.0
        %v1631 = vmax.f32 %v1524, 0.0
        %v1632 = vmax.f32 %v1528, 0.0
        %v1633 = vmax.f32 %v1530, 0.0
        %v1634 = vmax.f32 %v1532, 0.0
        %v1635 = vmax.f32 %v1534, 0.0
        %v1636 = vmax.f32 %v1538, 0.0
        %v1637 = vmax.f32 %v1540, 0.0
        %v1638 = vmax.f32 %v1542, 0.0
        %v1639 = vmax.f32 %v1544, 0.0
        %v1640 = vmax.f32 %v1548, 0.0
        %v1641 = vmax.f32 %v1550, 0.0
        %v1642 = vmax.f32 %v1552, 0.0
        %v1643 = vmax.f32 %v1554, 0.0
        %v1644 = vmax.f32 %v1558, 0.0
        %v1645 = vmax.f32 %v1560, 0.0
        %v1646 = vmax.f32 %v1562, 0.0
        %v1647 = vmax.f32 %v1564, 0.0
        %v1648 = vmax.f32 %v1568, 0.0
        %v1649 = vmax.f32 %v1570, 0.0
        %v1650 = vmax.f32 %v1572, 0.0
        %v1651 = vmax.f32 %v1574, 0.0
        %v1652 = vmax.f32 %v1578, 0.0
        %v1653 = vmax.f32 %v1580, 0.0
        %v1654 = vmax.f32 %v1582, 0.0
        %v1655 = vmax.f32 %v1584, 0.0
        %v1656 = vmax.f32 %v1588, 0.0
        %v1657 = vmax.f32 %v1590, 0.0
        %v1658 = vmax.f32 %v1592, 0.0
        %v1659 = vmax.f32 %v1594, 0.0
        %v1660 = vld [vmem:[%s5] sm:$0xff]
        %v1661 = vld [vmem:[%s5 + $0x8] sm:$0xff]
        %v1662 = vld [vmem:[%s5 + $0x10] sm:$0xff]
        %v1663 = vld [vmem:[%s5 + $0x18] sm:$0xff]
        %v1664 = vld [vmem:[%s5 + $0x20] sm:$0xff]
        %v1665 = vld [vmem:[%s5 + $0x28] sm:$0xff]
        %v1666 = vld [vmem:[%s5 + $0x30] sm:$0xff]
        %v1667 = vld [vmem:[%s5 + $0x38] sm:$0xff]
        %v1668 = vld [vmem:[%s5 + $0x40] sm:$0xff]
        %v1669 = vld [vmem:[%s5 + $0x48] sm:$0xff]
        %v1670 = vld [vmem:[%s5 + $0x50] sm:$0xff]
        %v1671 = vld [vmem:[%s5 + $0x58] sm:$0xff]
        %v1672 = vld [vmem:[%s5 + $0x60] sm:$0xff]
        %v1673 = vld [vmem:[%s5 + $0x68] sm:$0xff]
        %v1674 = vld [vmem:[%s5 + $0x70] sm:$0xff]
        %v1675 = vld [vmem:[%s5 + $0x78] sm:$0xff]
        %v1676 = vld [vmem:[%s5 + $0x80] sm:$0xff]
        %v1677 = vld [vmem:[%s5 + $0x88] sm:$0xff]
        %v1678 = vld [vmem:[%s5 + $0x90] sm:$0xff]
        %v1679 = vld [vmem:[%s5 + $0x98] sm:$0xff]
        %v1680 = vld [vmem:[%s5 + $0xa0] sm:$0xff]
        %v1681 = vld [vmem:[%s5 + $0xa8] sm:$0xff]
        %v1682 = vld [vmem:[%s5 + $0xb0] sm:$0xff]
        %v1683 = vld [vmem:[%s5 + $0xb8] sm:$0xff]
        %v1684 = vld [vmem:[%s5 + $0xc0] sm:$0xff]
        %v1685 = vld [vmem:[%s5 + $0xc8] sm:$0xff]
        %v1686 = vld [vmem:[%s5 + $0xd0] sm:$0xff]
        %v1687 = vld [vmem:[%s5 + $0xd8] sm:$0xff]
        %v1688 = vld [vmem:[%s5 + $0xe0] sm:$0xff]
        %v1689 = vld [vmem:[%s5 + $0xe8] sm:$0xff]
        %v1690 = vld [vmem:[%s5 + $0xf0] sm:$0xff]
        %v1691 = vld [vmem:[%s5 + $0xf8] sm:$0xff]
        %1693 = vset.pattern.permute.xlu0 0
        %1694 = vperm.xlu0 %1693, %v1660
        %v1695 = vpop.permute.xlu0 %1694
        %1698 = vset.pattern.permute.xlu0 0
        %1699 = vperm.xlu0 %1698, %v1661
        %v1700 = vpop.permute.xlu0 %1699
        %1703 = vset.pattern.permute.xlu0 0
        %1704 = vperm.xlu0 %1703, %v1662
        %v1705 = vpop.permute.xlu0 %1704
        %1708 = vset.pattern.permute.xlu0 0
        %1709 = vperm.xlu0 %1708, %v1663
        %v1710 = vpop.permute.xlu0 %1709
        %1713 = vset.pattern.permute.xlu0 0
        %1714 = vperm.xlu0 %1713, %v1664
        %v1715 = vpop.permute.xlu0 %1714
        %1718 = vset.pattern.permute.xlu0 0
        %1719 = vperm.xlu0 %1718, %v1665
        %v1720 = vpop.permute.xlu0 %1719
        %1723 = vset.pattern.permute.xlu0 0
        %1724 = vperm.xlu0 %1723, %v1666
        %v1725 = vpop.permute.xlu0 %1724
        %1728 = vset.pattern.permute.xlu0 0
        %1729 = vperm.xlu0 %1728, %v1667
        %v1730 = vpop.permute.xlu0 %1729
        %1733 = vset.pattern.permute.xlu0 0
        %1734 = vperm.xlu0 %1733, %v1668
        %v1735 = vpop.permute.xlu0 %1734
        %1738 = vset.pattern.permute.xlu0 0
        %1739 = vperm.xlu0 %1738, %v1669
        %v1740 = vpop.permute.xlu0 %1739
        %1743 = vset.pattern.permute.xlu0 0
        %1744 = vperm.xlu0 %1743, %v1670
        %v1745 = vpop.permute.xlu0 %1744
        %1748 = vset.pattern.permute.xlu0 0
        %1749 = vperm.xlu0 %1748, %v1671
        %v1750 = vpop.permute.xlu0 %1749
        %1753 = vset.pattern.permute.xlu0 0
        %1754 = vperm.xlu0 %1753, %v1672
        %v1755 = vpop.permute.xlu0 %1754
        %1758 = vset.pattern.permute.xlu0 0
        %1759 = vperm.xlu0 %1758, %v1673
        %v1760 = vpop.permute.xlu0 %1759
        %1763 = vset.pattern.permute.xlu0 0
        %1764 = vperm.xlu0 %1763, %v1674
        %v1765 = vpop.permute.xlu0 %1764
        %1768 = vset.pattern.permute.xlu0 0
        %1769 = vperm.xlu0 %1768, %v1675
        %v1770 = vpop.permute.xlu0 %1769
        %1773 = vset.pattern.permute.xlu0 0
        %1774 = vperm.xlu0 %1773, %v1676
        %v1775 = vpop.permute.xlu0 %1774
        %1778 = vset.pattern.permute.xlu0 0
        %1779 = vperm.xlu0 %1778, %v1677
        %v1780 = vpop.permute.xlu0 %1779
        %1783 = vset.pattern.permute.xlu0 0
        %1784 = vperm.xlu0 %1783, %v1678
        %v1785 = vpop.permute.xlu0 %1784
        %1788 = vset.pattern.permute.xlu0 0
        %1789 = vperm.xlu0 %1788, %v1679
        %v1790 = vpop.permute.xlu0 %1789
        %1793 = vset.pattern.permute.xlu0 0
        %1794 = vperm.xlu0 %1793, %v1680
        %v1795 = vpop.permute.xlu0 %1794
        %1798 = vset.pattern.permute.xlu0 0
        %1799 = vperm.xlu0 %1798, %v1681
        %v1800 = vpop.permute.xlu0 %1799
        %1803 = vset.pattern.permute.xlu0 0
        %1804 = vperm.xlu0 %1803, %v1682
        %v1805 = vpop.permute.xlu0 %1804
        %1808 = vset.pattern.permute.xlu0 0
        %1809 = vperm.xlu0 %1808, %v1683
        %v1810 = vpop.permute.xlu0 %1809
        %1813 = vset.pattern.permute.xlu0 0
        %1814 = vperm.xlu0 %1813, %v1684
        %v1815 = vpop.permute.xlu0 %1814
        %1818 = vset.pattern.permute.xlu0 0
        %1819 = vperm.xlu0 %1818, %v1685
        %v1820 = vpop.permute.xlu0 %1819
        %1823 = vset.pattern.permute.xlu0 0
        %1824 = vperm.xlu0 %1823, %v1686
        %v1825 = vpop.permute.xlu0 %1824
        %1828 = vset.pattern.permute.xlu0 0
        %1829 = vperm.xlu0 %1828, %v1687
        %v1830 = vpop.permute.xlu0 %1829
        %1833 = vset.pattern.permute.xlu0 0
        %1834 = vperm.xlu0 %1833, %v1688
        %v1835 = vpop.permute.xlu0 %1834
        %1838 = vset.pattern.permute.xlu0 0
        %1839 = vperm.xlu0 %1838, %v1689
        %v1840 = vpop.permute.xlu0 %1839
        %1843 = vset.pattern.permute.xlu0 0
        %1844 = vperm.xlu0 %1843, %v1690
        %v1845 = vpop.permute.xlu0 %1844
        %1848 = vset.pattern.permute.xlu0 0
        %1849 = vperm.xlu0 %1848, %v1691
        %v1850 = vpop.permute.xlu0 %1849
        %v1852 = vmul.f32 %v1596, %v1695
        %v1853 = vmul.f32 %v1597, %v1695
        %v1854 = vmul.f32 %v1598, %v1700
        %v1855 = vmul.f32 %v1599, %v1700
        %v1856 = vmul.f32 %v1600, %v1705
        %v1857 = vmul.f32 %v1601, %v1705
        %v1858 = vmul.f32 %v1602, %v1710
        %v1859 = vmul.f32 %v1603, %v1710
        %v1860 = vmul.f32 %v1604, %v1715
        %v1861 = vmul.f32 %v1605, %v1715
        %v1862 = vmul.f32 %v1606, %v1720
        %v1863 = vmul.f32 %v1607, %v1720
        %v1864 = vmul.f32 %v1608, %v1725
        %v1865 = vmul.f32 %v1609, %v1725
        %v1866 = vmul.f32 %v1610, %v1730
        %v1867 = vmul.f32 %v1611, %v1730
        %v1868 = vmul.f32 %v1612, %v1735
        %v1869 = vmul.f32 %v1613, %v1735
        %v1870 = vmul.f32 %v1614, %v1740
        %v1871 = vmul.f32 %v1615, %v1740
        %v1872 = vmul.f32 %v1616, %v1745
        %v1873 = vmul.f32 %v1617, %v1745
        %v1874 = vmul.f32 %v1618, %v1750
        %v1875 = vmul.f32 %v1619, %v1750
        %v1876 = vmul.f32 %v1620, %v1755
        %v1877 = vmul.f32 %v1621, %v1755
        %v1878 = vmul.f32 %v1622, %v1760
        %v1879 = vmul.f32 %v1623, %v1760
        %v1880 = vmul.f32 %v1624, %v1765
        %v1881 = vmul.f32 %v1625, %v1765
        %v1882 = vmul.f32 %v1626, %v1770
        %v1883 = vmul.f32 %v1627, %v1770
        %v1884 = vmul.f32 %v1628, %v1775
        %v1885 = vmul.f32 %v1629, %v1775
        %v1886 = vmul.f32 %v1630, %v1780
        %v1887 = vmul.f32 %v1631, %v1780
        %v1888 = vmul.f32 %v1632, %v1785
        %v1889 = vmul.f32 %v1633, %v1785
        %v1890 = vmul.f32 %v1634, %v1790
        %v1891 = vmul.f32 %v1635, %v1790
        %v1892 = vmul.f32 %v1636, %v1795
        %v1893 = vmul.f32 %v1637, %v1795
        %v1894 = vmul.f32 %v1638, %v1800
        %v1895 = vmul.f32 %v1639, %v1800
        %v1896 = vmul.f32 %v1640, %v1805
        %v1897 = vmul.f32 %v1641, %v1805
        %v1898 = vmul.f32 %v1642, %v1810
        %v1899 = vmul.f32 %v1643, %v1810
        %v1900 = vmul.f32 %v1644, %v1815
        %v1901 = vmul.f32 %v1645, %v1815
        %v1902 = vmul.f32 %v1646, %v1820
        %v1903 = vmul.f32 %v1647, %v1820
        %v1904 = vmul.f32 %v1648, %v1825
        %v1905 = vmul.f32 %v1649, %v1825
        %v1906 = vmul.f32 %v1650, %v1830
        %v1907 = vmul.f32 %v1651, %v1830
        %v1908 = vmul.f32 %v1652, %v1835
        %v1909 = vmul.f32 %v1653, %v1835
        %v1910 = vmul.f32 %v1654, %v1840
        %v1911 = vmul.f32 %v1655, %v1840
        %v1912 = vmul.f32 %v1656, %v1845
        %v1913 = vmul.f32 %v1657, %v1845
        %v1914 = vmul.f32 %v1658, %v1850
        %v1915 = vmul.f32 %v1659, %v1850
        %v1916 = vadd.f32 %v1852, %v1854
        %v1917 = vadd.f32 %v1916, %v1856
        %v1918 = vadd.f32 %v1917, %v1858
        %v1919 = vadd.f32 %v1918, %v1860
        %v1920 = vadd.f32 %v1919, %v1862
        %v1921 = vadd.f32 %v1920, %v1864
        %v1922 = vadd.f32 %v1921, %v1866
        %v1923 = vadd.f32 %v1922, %v1868
        %v1924 = vadd.f32 %v1923, %v1870
        %v1925 = vadd.f32 %v1924, %v1872
        %v1926 = vadd.f32 %v1925, %v1874
        %v1927 = vadd.f32 %v1926, %v1876
        %v1928 = vadd.f32 %v1927, %v1878
        %v1929 = vadd.f32 %v1928, %v1880
        %v1930 = vadd.f32 %v1929, %v1882
        %v1931 = vadd.f32 %v1930, %v1884
        %v1932 = vadd.f32 %v1931, %v1886
        %v1933 = vadd.f32 %v1932, %v1888
        %v1934 = vadd.f32 %v1933, %v1890
        %v1935 = vadd.f32 %v1934, %v1892
        %v1936 = vadd.f32 %v1935, %v1894
        %v1937 = vadd.f32 %v1936, %v1896
        %v1938 = vadd.f32 %v1937, %v1898
        %v1939 = vadd.f32 %v1938, %v1900
        %v1940 = vadd.f32 %v1939, %v1902
        %v1941 = vadd.f32 %v1940, %v1904
        %v1942 = vadd.f32 %v1941, %v1906
        %v1943 = vadd.f32 %v1942, %v1908
        %v1944 = vadd.f32 %v1943, %v1910
        %v1945 = vadd.f32 %v1944, %v1912
        %v1946 = vadd.f32 %v1945, %v1914
        %v1947 = vrot.slane %v1946, 4
        %v1948 = vadd.f32 %v1946, %v1947
        %v1949 = vrot.slane %v1948, 2
        %v1950 = vadd.f32 %v1948, %v1949
        %v1951 = vrot.slane %v1950, 1
        %v1952 = vadd.f32 %v1950, %v1951
        %v1953 = vadd.f32 %v1853, %v1855
        %v1954 = vadd.f32 %v1953, %v1857
        %v1955 = vadd.f32 %v1954, %v1859
        %v1956 = vadd.f32 %v1955, %v1861
        %v1957 = vadd.f32 %v1956, %v1863
        %v1958 = vadd.f32 %v1957, %v1865
        %v1959 = vadd.f32 %v1958, %v1867
        %v1960 = vadd.f32 %v1959, %v1869
        %v1961 = vadd.f32 %v1960, %v1871
        %v1962 = vadd.f32 %v1961, %v1873
        %v1963 = vadd.f32 %v1962, %v1875
        %v1964 = vadd.f32 %v1963, %v1877
        %v1965 = vadd.f32 %v1964, %v1879
        %v1966 = vadd.f32 %v1965, %v1881
        %v1967 = vadd.f32 %v1966, %v1883
        %v1968 = vadd.f32 %v1967, %v1885
        %v1969 = vadd.f32 %v1968, %v1887
        %v1970 = vadd.f32 %v1969, %v1889
        %v1971 = vadd.f32 %v1970, %v1891
        %v1972 = vadd.f32 %v1971, %v1893
        %v1973 = vadd.f32 %v1972, %v1895
        %v1974 = vadd.f32 %v1973, %v1897
        %v1975 = vadd.f32 %v1974, %v1899
        %v1976 = vadd.f32 %v1975, %v1901
        %v1977 = vadd.f32 %v1976, %v1903
        %v1978 = vadd.f32 %v1977, %v1905
        %v1979 = vadd.f32 %v1978, %v1907
        %v1980 = vadd.f32 %v1979, %v1909
        %v1981 = vadd.f32 %v1980, %v1911
        %v1982 = vadd.f32 %v1981, %v1913
        %v1983 = vadd.f32 %v1982, %v1915
        %v1984 = vrot.slane %v1983, 4
        %v1985 = vadd.f32 %v1983, %v1984
        %v1986 = vrot.slane %v1985, 2
        %v1987 = vadd.f32 %v1985, %v1986
        %v1988 = vrot.slane %v1987, 1
        %v1989 = vadd.f32 %v1987, %v1988
        %s1990 = sld [smem:[#allocation2]]
        %v1991 = vstv %s1990
        %v1992 = vadd.f32 %v1952, %v1991
        %v1993 = vadd.f32 %v1989, %v1991
        %v1996 = vcombine.low %v1992, %v1993
        %v1998 = vunpack.c.l.s4 1966171168
        %v1999 = vunpack.c.0.s8 %v1998
        %v2000 = vlaneseq
        %v2001 = vshrl.u32 %v2000, 7
        %v2002 = vsub.s32 %v1999, %v2001
        %v2003 = vrot.slane %v1996, %v2002
        %v2005 = vunpack.c.l.s4 1966171168
        %v2006 = vunpack.c.0.s8 %v2005
        %v2007 = vlaneseq
        %v2008 = vshrl.u32 %v2007, 7
        %v2009 = vsub.s32 %v2006, %v2008
        %v2010 = vrot.slane %v2003, %v2009
        %v2012 = vlaneseq
        %vm2013 = vcmp.ge.s32.totalorder %v2012, 0
        %vm2014 = vcmp.lt.s32.totalorder %v2012, 256
        %vm2015 = vmand %vm2013, %vm2014
        %2016 = vst.msk [vmem:[%s273] sm:$0x3] %vm2015, %v2010
        %s2017 = sand.u32 %s182, 1
        %s2018 = scalar_lea.sflag [#allocation4], %s2017
        %s2019 = sand.u32 %s182, 1
        %s2020 = smul.addr %s2019, 2
        %s2021 = scalar_lea.vmem [#allocation3], %s2020
        // Predicated region
        $region49: #{value_net_forward.1} parent=47 // pred_check
          %p2022 = pneg %p192
        $region50: #{value_net_forward.1} parent=47 // pred_check_branch
          %2024 = sbr.rel (%p2022) target = $region52
        $region51: #{value_net_forward.1} parent=47 // pred_region
          %s2026 = ssub.s32 32, 32
          %2027 = vsyncadd %s2018, %s2026
          %s2028 = smul.addr %s22, 2
          %s2029 = smul.addr %s2028, 16
          %s2030 = scalar_lea.hbm %s7, %s2029
          %s2032 = sshll.u32 %s2021, 4
          %s2033 = int_to_ptr.vmem [resolvable:$true] %s2032
          %2035 = dma.vmem_to_hbm [thread:$0]  %s2033, 32, %s2030, %s2018
        $region52: #{value_net_forward.1} parent=47 // pred_fallthru
          _
      $region48: #{value_net_forward.1} parent=5 // pred_fallthru
        _
      %p2036 = scmp.le.s32.totalorder 2, %s17
      // Predicated region
      $region53: #{value_net_forward.1} parent=5 // pred_check
        %p2037 = pneg %p2036
      $region54: #{value_net_forward.1} parent=5 // pred_check_branch
        %2039 = sbr.rel (%p2037) target = $region56
      $region55: #{value_net_forward.1} parent=5 // pred_region
        %s2040 = ssub.s32 %s17, 2
        // Predicated region
        $region57: #{value_net_forward.1} parent=55 // pred_check
          %p2041 = pneg %p198
        $region58: #{value_net_forward.1} parent=55 // pred_check_branch
          %2043 = sbr.rel (%p2041) target = $region60
        $region59: #{value_net_forward.1} parent=55 // pred_region
          %s2044 = sand.u32 %s183, 1
          %s2045 = scalar_lea.sflag [#allocation4], %s2044
          %s2046 = sand.u32 %s183, 1
          %s2047 = smul.addr %s2046, 2
          %s2048 = scalar_lea.vmem [#allocation3], %s2047
          %2049 = dma.done %s2045, 32
        $region60: #{value_net_forward.1} parent=55 // pred_fallthru
          _
      $region56: #{value_net_forward.1} parent=5 // pred_fallthru
        _
    $region6: #{value_net_forward.1} parent=1 // loop_footer
      %s21 = sadd.s32 1, %s17
    $region7: #{value_net_forward.1} parent=1 // loop_footer_branch
      %16 = sbr.rel target = $region3
    $region8: #{value_net_forward.1} parent=1 // loop_exit
      _
    %2050 = vsyncpa [#allocation4], 1
    %s2051 = scalar_lea.sflag [#allocation4], 1
    %2052 = vsyncpa %s2051, 1

</llo_original>
